<compile_context>
chip_gen: v6e
topology: v6e:2x2x1
jax: 0.10.0
libtpu: 0.0.40
codegen_flags: <defaults>
</compile_context>

<pallas_src>
import jax
import jax.numpy as jnp
from jax.experimental import pallas as pl
from jax.experimental.pallas import tpu as pltpu

TB = 512  # default batch tile; sweep 512-2048 for very large batches.


def _round_up(n, m):
    return ((n + m - 1) // m) * m


def mlp_kernel(x_ref, w1_ref, b1_ref, w3_ref, b3_ref, wp_ref, bp_ref, o_ref):
    cdt = w1_ref.dtype                                   # compute dtype (bf16)
    x = x_ref[...].astype(cdt)                           # (tile, 64)

    # fc1 + relu  (bf16 x bf16 -> f32 accumulation on the MXU)
    h = jnp.dot(x, w1_ref[...], preferred_element_type=jnp.float32) + b1_ref[...]
    h = jnp.maximum(h, 0.0)

    # fc3 + relu
    h = jnp.dot(h.astype(cdt), w3_ref[...],
                preferred_element_type=jnp.float32) + b3_ref[...]
    h = jnp.maximum(h, 0.0)

    # predict + relu  (N=10 unpadded: masked vst, but ~12x less HBM writeback)
    y = jnp.dot(h.astype(cdt), wp_ref[...],
                preferred_element_type=jnp.float32) + bp_ref[...]
    o_ref[...] = jnp.maximum(y, 0.0).astype(o_ref.dtype)


def prepare_params(params, compute_dtype=jnp.bfloat16):
    """One-time cast of weights to the compute dtype; biases stay f32."""
    w1, b1, w3, b3, wp, bp = params
    return (w1.astype(compute_dtype), b1.astype(jnp.float32),
            w3.astype(compute_dtype), b3.astype(jnp.float32),
            wp.astype(compute_dtype), bp.astype(jnp.float32))


def net_forward(x, prepared_params, *, tb=TB):
    w1, b1, w3, b3, wp, bp = prepared_params
    B, F = x.shape
    out_f = wp.shape[1]

    # Batch tile: multiple of 16 (bf16 sublane packing). No padding of x;
    # the cdiv grid plus Pallas edge-block masking handles a ragged last tile
    # (garbage rows in the padded region are computed but never stored).
    tile = min(tb, _round_up(B, 16))
    nb = pl.cdiv(B, tile)

    resident = lambda shape: pl.BlockSpec(shape, lambda i: (0, 0))

    return pl.pallas_call(
        mlp_kernel,
        out_shape=jax.ShapeDtypeStruct((B, out_f), jnp.float32),
        grid_spec=pltpu.PrefetchScalarGridSpec(
            num_scalar_prefetch=0,
            grid=(nb,),
            in_specs=[
                pl.BlockSpec((tile, F), lambda i: (i, 0)),  # x: streamed tile
                resident((F, F)),                           # w1 (VMEM-resident)
                resident((1, F)),                           # b1
                resident((F, F)),                           # w3
                resident((1, F)),                           # b3
                resident((F, out_f)),                       # wp (unpadded 64x10)
                resident((1, out_f)),                       # bp
            ],
            out_specs=pl.BlockSpec((tile, out_f), lambda i: (i, 0)),
        ),
        compiler_params=pltpu.CompilerParams(
            # Batch axis is fully independent -> "parallel".
            # TODO(synk): on v7x, use pltpu.CORE_PARALLEL here (and ensure the
            # grid length is >= 2, ideally even) so both TensorCores split it.
            dimension_semantics=("parallel",),
        ),
    )(x, w1, b1, w3, b3, wp, bp)


def init_params(key):
    # Deterministic init mimicking nn.Linear default (uniform +-1/sqrt(fan_in)).
    def linear(key, fan_in, fan_out):
        kw, kb = jax.random.split(key)
        bound = 1.0 / jnp.sqrt(fan_in)
        w = jax.random.uniform(kw, (fan_in, fan_out), jnp.float32, -bound, bound)
        b = jax.random.uniform(kb, (1, fan_out), jnp.float32, -bound, bound)
        return w, b

    k1, k3, kp = jax.random.split(key, 3)
    w1, b1 = linear(k1, 64, 64)
    w3, b3 = linear(k3, 64, 64)
    wp, bp = linear(kp, 64, 10)
    return (w1, b1, w3, b3, wp, bp)


if __name__ == "__main__":
    key = jax.random.PRNGKey(0)
    kx, kparams = jax.random.split(key)

    # B=1000: exercises a multi-tile grid (2 x 512) AND a ragged last block.
    B = 1000
    x = jax.random.normal(kx, (B, 64), jnp.float32)
    params = init_params(kparams)
    prepared = prepare_params(params)          # weight casts hoisted, done once

    out = net_forward(x, prepared)
    jax.block_until_ready(out)

    # Pure-JAX reference using the same bf16-rounded operands (f32 accumulation).
    w1, b1, w3, b3, wp, bp = params
    up = lambda a: a.astype(jnp.bfloat16).astype(jnp.float32)
    ref = jnp.maximum(up(x) @ up(w1) + b1, 0.0)
    ref = jnp.maximum(up(ref) @ up(w3) + b3, 0.0)
    ref = jnp.maximum(up(ref) @ up(wp) + bp, 0.0)

    assert out.shape == (B, 10)
    assert out.dtype == jnp.float32
    assert jnp.allclose(out, ref, atol=5e-3, rtol=5e-3), (
        float(jnp.max(jnp.abs(out - ref))))

    print("KERNEL_OK")
</pallas_src>

<mosaic_0001>
module attributes {stable_mosaic.version = 11 : i64} {
  func.func @mlp_kernel(%arg0: i32, %arg1: memref<512x64xf32, #tpu.memory_space<vmem>>, %arg2: memref<64x64xbf16, #tpu.memory_space<vmem>>, %arg3: memref<1x64xf32, #tpu.memory_space<vmem>>, %arg4: memref<64x64xbf16, #tpu.memory_space<vmem>>, %arg5: memref<1x64xf32, #tpu.memory_space<vmem>>, %arg6: memref<64x10xbf16, #tpu.memory_space<vmem>>, %arg7: memref<1x10xf32, #tpu.memory_space<vmem>>, %arg8: memref<512x10xf32, #tpu.memory_space<vmem>>) attributes {dimension_semantics = [#tpu.dimension_semantics<parallel>], iteration_bounds = array<i64: 2>, scalar_prefetch = 0 : i64, scratch_operands = 0 : i64, tpu.core_type = #tpu.core_type<tc>, window_params = [{transform_indices = @transform_0, window_bounds = array<i64: 512, 64>}, {pipeline_mode = #tpu.pipeline_mode<synchronous>, transform_indices = @transform_1, window_bounds = array<i64: 64, 64>}, {pipeline_mode = #tpu.pipeline_mode<synchronous>, transform_indices = @transform_2, window_bounds = array<i64: 1, 64>}, {pipeline_mode = #tpu.pipeline_mode<synchronous>, transform_indices = @transform_3, window_bounds = array<i64: 64, 64>}, {pipeline_mode = #tpu.pipeline_mode<synchronous>, transform_indices = @transform_4, window_bounds = array<i64: 1, 64>}, {pipeline_mode = #tpu.pipeline_mode<synchronous>, transform_indices = @transform_5, window_bounds = array<i64: 64, 10>}, {pipeline_mode = #tpu.pipeline_mode<synchronous>, transform_indices = @transform_6, window_bounds = array<i64: 1, 10>}, {transform_indices = @transform_7, window_bounds = array<i64: 512, 10>}]} {
    %c0 = arith.constant 0 : index
    %c0_0 = arith.constant 0 : index
    %0 = vector.load %arg1[%c0, %c0_0] : memref<512x64xf32, #tpu.memory_space<vmem>>, vector<512x64xf32>
    %1 = arith.truncf %0 : vector<512x64xf32> to vector<512x64xbf16>
    %c0_1 = arith.constant 0 : index
    %c0_2 = arith.constant 0 : index
    %2 = vector.load %arg2[%c0_1, %c0_2] : memref<64x64xbf16, #tpu.memory_space<vmem>>, vector<64x64xbf16>
    %cst = arith.constant dense<0.000000e+00> : vector<512x64xf32>
    %3 = tpu.matmul %1, %2, %cst {dimension_numbers = #tpu.dot_dimension_numbers<[1], [0], [0], [1], [0, 0, 1, 1], [], []>} : vector<512x64xbf16>, vector<64x64xbf16>, vector<512x64xf32> -> vector<512x64xf32>
    %c0_3 = arith.constant 0 : index
    %c0_4 = arith.constant 0 : index
    %4 = vector.load %arg3[%c0_3, %c0_4] : memref<1x64xf32, #tpu.memory_space<vmem>>, vector<1x64xf32>
    %5 = vector.broadcast %4 : vector<1x64xf32> to vector<512x64xf32>
    %6 = arith.addf %3, %5 : vector<512x64xf32>
    %cst_5 = arith.constant 0.000000e+00 : f32
    %7 = vector.broadcast %cst_5 : f32 to vector<512x64xf32>
    %8 = arith.maximumf %6, %7 : vector<512x64xf32>
    %9 = arith.truncf %8 : vector<512x64xf32> to vector<512x64xbf16>
    %c0_6 = arith.constant 0 : index
    %c0_7 = arith.constant 0 : index
    %10 = vector.load %arg4[%c0_6, %c0_7] : memref<64x64xbf16, #tpu.memory_space<vmem>>, vector<64x64xbf16>
    %cst_8 = arith.constant dense<0.000000e+00> : vector<512x64xf32>
    %11 = tpu.matmul %9, %10, %cst_8 {dimension_numbers = #tpu.dot_dimension_numbers<[1], [0], [0], [1], [0, 0, 1, 1], [], []>} : vector<512x64xbf16>, vector<64x64xbf16>, vector<512x64xf32> -> vector<512x64xf32>
    %c0_9 = arith.constant 0 : index
    %c0_10 = arith.constant 0 : index
    %12 = vector.load %arg5[%c0_9, %c0_10] : memref<1x64xf32, #tpu.memory_space<vmem>>, vector<1x64xf32>
    %13 = vector.broadcast %12 : vector<1x64xf32> to vector<512x64xf32>
    %14 = arith.addf %11, %13 : vector<512x64xf32>
    %cst_11 = arith.constant 0.000000e+00 : f32
    %15 = vector.broadcast %cst_11 : f32 to vector<512x64xf32>
    %16 = arith.maximumf %14, %15 : vector<512x64xf32>
    %17 = arith.truncf %16 : vector<512x64xf32> to vector<512x64xbf16>
    %c0_12 = arith.constant 0 : index
    %c0_13 = arith.constant 0 : index
    %18 = vector.load %arg6[%c0_12, %c0_13] : memref<64x10xbf16, #tpu.memory_space<vmem>>, vector<64x10xbf16>
    %cst_14 = arith.constant dense<0.000000e+00> : vector<512x10xf32>
    %19 = tpu.matmul %17, %18, %cst_14 {dimension_numbers = #tpu.dot_dimension_numbers<[1], [0], [0], [1], [0, 0, 1, 1], [], []>} : vector<512x64xbf16>, vector<64x10xbf16>, vector<512x10xf32> -> vector<512x10xf32>
    %c0_15 = arith.constant 0 : index
    %c0_16 = arith.constant 0 : index
    %20 = vector.load %arg7[%c0_15, %c0_16] : memref<1x10xf32, #tpu.memory_space<vmem>>, vector<1x10xf32>
    %21 = vector.broadcast %20 : vector<1x10xf32> to vector<512x10xf32>
    %22 = arith.addf %19, %21 : vector<512x10xf32>
    %cst_17 = arith.constant 0.000000e+00 : f32
    %23 = vector.broadcast %cst_17 : f32 to vector<512x10xf32>
    %24 = arith.maximumf %22, %23 : vector<512x10xf32>
    %c0_18 = arith.constant 0 : index
    %c0_19 = arith.constant 0 : index
    %25 = vector.load %arg8[%c0_18, %c0_19] : memref<512x10xf32, #tpu.memory_space<vmem>>, vector<512x10xf32>
    tpu.vector_store %arg8[%c0_18, %c0_19], %24 {strides = array<i32>} : memref<512x10xf32, #tpu.memory_space<vmem>>, vector<512x10xf32>,
    return
  }
  func.func @transform_0(%arg0: i32) -> (i32, i32) {
    %c0_i32 = arith.constant 0 : i32
    %c0_i32_0 = arith.constant 0 : i32
    return %arg0, %c0_i32 : i32, i32
  }
  func.func @transform_1(%arg0: i32) -> (i32, i32) {
    %c0_i32 = arith.constant 0 : i32
    %c0_i32_0 = arith.constant 0 : i32
    %c0_i32_1 = arith.constant 0 : i32
    return %c0_i32, %c0_i32_0 : i32, i32
  }
  func.func @transform_2(%arg0: i32) -> (i32, i32) {
    %c0_i32 = arith.constant 0 : i32
    %c0_i32_0 = arith.constant 0 : i32
    %c0_i32_1 = arith.constant 0 : i32
    return %c0_i32, %c0_i32_0 : i32, i32
  }
  func.func @transform_3(%arg0: i32) -> (i32, i32) {
    %c0_i32 = arith.constant 0 : i32
    %c0_i32_0 = arith.constant 0 : i32
    %c0_i32_1 = arith.constant 0 : i32
    return %c0_i32, %c0_i32_0 : i32, i32
  }
  func.func @transform_4(%arg0: i32) -> (i32, i32) {
    %c0_i32 = arith.constant 0 : i32
    %c0_i32_0 = arith.constant 0 : i32
    %c0_i32_1 = arith.constant 0 : i32
    return %c0_i32, %c0_i32_0 : i32, i32
  }
  func.func @transform_5(%arg0: i32) -> (i32, i32) {
    %c0_i32 = arith.constant 0 : i32
    %c0_i32_0 = arith.constant 0 : i32
    %c0_i32_1 = arith.constant 0 : i32
    return %c0_i32, %c0_i32_0 : i32, i32
  }
  func.func @transform_6(%arg0: i32) -> (i32, i32) {
    %c0_i32 = arith.constant 0 : i32
    %c0_i32_0 = arith.constant 0 : i32
    %c0_i32_1 = arith.constant 0 : i32
    return %c0_i32, %c0_i32_0 : i32, i32
  }
  func.func @transform_7(%arg0: i32) -> (i32, i32) {
    %c0_i32 = arith.constant 0 : i32
    %c0_i32_0 = arith.constant 0 : i32
    return %arg0, %c0_i32 : i32, i32
  }
}

</mosaic_0001>

<llo_original>
// kernel: tpu_custom_call.1
$region0: #{tpu_custom_call.1}
  #allocation0 [shape = 'u32[]', space=smem, size = 0x4, offset = 0x4, fixed_abs, tag = 'smem constant byte address 0x4 - core index']
  #allocation1 [shape = 'u32[144,128]{1,0:T(1,128)}', space=vmem, size = 0x12000, scoped, tag = 'internal scratch']
  %s0 = inlined_call_operand.vmem [shape: f32[1000,64], index: 0, kind: input, shape index: {}]
  %s1 = inlined_call_operand.vmem [shape: bf16[64,64], index: 1, kind: input, shape index: {}]
  %s2 = inlined_call_operand.vmem [shape: f32[1,64], index: 2, kind: input, shape index: {}]
  %s3 = inlined_call_operand.vmem [shape: bf16[64,64], index: 3, kind: input, shape index: {}]
  %s4 = inlined_call_operand.vmem [shape: f32[1,64], index: 4, kind: input, shape index: {}]
  %s5 = inlined_call_operand.vmem [shape: bf16[64,10], index: 5, kind: input, shape index: {}]
  %s6 = inlined_call_operand.vmem [shape: f32[1,10], index: 6, kind: input, shape index: {}]
  %s7 = inlined_call_operand.vmem [shape: f32[1000,10], index: 7, kind: output, shape index: {}]
  %s8 = sld [smem:[#allocation0]]
  $region109: #{tpu_custom_call.1} parent=0
    _
  %s10 = ssub.s32 1, %s8
  %s11 = scalar_select 0, %s10, %s8
  $region1: #{tpu_custom_call.1} parent=0
    #allocation2 [shape = 'u8[524288]{0}', space=vmem, size = 0x80000, scoped, tag = 'output window, operand 0']
    loop: start=0, step=1, limit=4
    $region2: #{tpu_custom_call.1} parent=1 // loop_pre_header
      _
    $region3: #{tpu_custom_call.1} parent=1 // loop_header
      %s13 = sphi 0, %s17
      %p14 = scmp.ge.s32.totalorder %s13, 4
      %s23 = sphi 0, %s25
      %s26 = sphi 0, %s23
      %s27 = sphi 0, %s26
      %s43 = sphi 0, %s27
      %s47 = sphi 0, %s47
      %s49 = sphi 0, %s47
      %s50 = sphi 0, %s49
      %s64 = sphi 0, %s50
      %s68 = sphi 0, %s68
      %s70 = sphi 0, %s68
      %s71 = sphi 0, %s70
      %s85 = sphi 0, %s71
      %s89 = sphi 0, %s89
      %s91 = sphi 0, %s89
      %s92 = sphi 0, %s91
      %s106 = sphi 0, %s92
      %s110 = sphi 0, %s110
      %s112 = sphi 0, %s110
      %s113 = sphi 0, %s112
      %s127 = sphi 0, %s113
      %s131 = sphi 0, %s131
      %s133 = sphi 0, %s131
      %s134 = sphi 0, %s133
      %s148 = sphi 0, %s134
      %s152 = sphi 0, %s152
      %s154 = sphi 0, %s152
      %s155 = sphi 0, %s154
      %s169 = sphi 0, %s155
      %s175 = sphi 0, %s177
      %s178 = sphi 0, %s175
      %s179 = sphi 0, %s178
      %s195 = sphi 0, %s179
    $region4: #{tpu_custom_call.1} parent=1 // loop_header_branch
      %16 = sbr.rel (%p14) target = $region8
    $region5: #{tpu_custom_call.1} parent=1 // loop_body
      %s18 = ssub.s32 %s13, 1
      %s19 = ssub.s32 %s13, 2
      %s20 = sadd.s32 %s13, 1
      %s21 = ssub.s32 %s13, %s20
      %p22 = scmp.eq.s32.totalorder %s21, 0
      %s24 = sadd.s32 %s23, 1
      %s25 = scalar_select %p22, %s23, %s24
      %p28 = pneg %p22
      %p29 = scmp.eq.s32.totalorder %s13, 1
      %p30 = por %p28, %p29
      %p31 = scmp.ne.s32.totalorder %s23, %s26
      %p32 = scmp.eq.s32.totalorder %s13, 0
      %p33 = por %p31, %p32
      %p34 = scmp.ne.s32.totalorder %s23, %s26
      %p35 = scmp.eq.s32.totalorder %s18, 1
      %p36 = por %p34, %p35
      %p37 = scmp.ne.s32.totalorder %s26, %s27
      %p38 = scmp.eq.s32.totalorder %s18, 0
      %p39 = por %p37, %p38
      %p40 = scmp.ne.s32.totalorder %s26, %s27
      %p41 = scmp.eq.s32.totalorder %s19, 1
      %p42 = por %p40, %p41
      %p44 = scmp.ne.s32.totalorder %s27, %s43
      %p45 = scmp.eq.s32.totalorder %s19, 0
      %p46 = por %p44, %p45
      %s48 = sadd.s32 %s47, 1
      %p51 = scmp.eq.s32.totalorder %s13, 1
      %p52 = scmp.ne.s32.totalorder %s47, %s49
      %p53 = scmp.eq.s32.totalorder %s13, 0
      %p54 = por %p52, %p53
      %p55 = scmp.ne.s32.totalorder %s47, %s49
      %p56 = scmp.eq.s32.totalorder %s18, 1
      %p57 = por %p55, %p56
      %p58 = scmp.ne.s32.totalorder %s49, %s50
      %p59 = scmp.eq.s32.totalorder %s18, 0
      %p60 = por %p58, %p59
      %p61 = scmp.ne.s32.totalorder %s49, %s50
      %p62 = scmp.eq.s32.totalorder %s19, 1
      %p63 = por %p61, %p62
      %p65 = scmp.ne.s32.totalorder %s50, %s64
      %p66 = scmp.eq.s32.totalorder %s19, 0
      %p67 = por %p65, %p66
      %s69 = sadd.s32 %s68, 1
      %p72 = scmp.eq.s32.totalorder %s13, 1
      %p73 = scmp.ne.s32.totalorder %s68, %s70
      %p74 = scmp.eq.s32.totalorder %s13, 0
      %p75 = por %p73, %p74
      %p76 = scmp.ne.s32.totalorder %s68, %s70
      %p77 = scmp.eq.s32.totalorder %s18, 1
      %p78 = por %p76, %p77
      %p79 = scmp.ne.s32.totalorder %s70, %s71
      %p80 = scmp.eq.s32.totalorder %s18, 0
      %p81 = por %p79, %p80
      %p82 = scmp.ne.s32.totalorder %s70, %s71
      %p83 = scmp.eq.s32.totalorder %s19, 1
      %p84 = por %p82, %p83
      %p86 = scmp.ne.s32.totalorder %s71, %s85
      %p87 = scmp.eq.s32.totalorder %s19, 0
      %p88 = por %p86, %p87
      %s90 = sadd.s32 %s89, 1
      %p93 = scmp.eq.s32.totalorder %s13, 1
      %p94 = scmp.ne.s32.totalorder %s89, %s91
      %p95 = scmp.eq.s32.totalorder %s13, 0
      %p96 = por %p94, %p95
      %p97 = scmp.ne.s32.totalorder %s89, %s91
      %p98 = scmp.eq.s32.totalorder %s18, 1
      %p99 = por %p97, %p98
      %p100 = scmp.ne.s32.totalorder %s91, %s92
      %p101 = scmp.eq.s32.totalorder %s18, 0
      %p102 = por %p100, %p101
      %p103 = scmp.ne.s32.totalorder %s91, %s92
      %p104 = scmp.eq.s32.totalorder %s19, 1
      %p105 = por %p103, %p104
      %p107 = scmp.ne.s32.totalorder %s92, %s106
      %p108 = scmp.eq.s32.totalorder %s19, 0
      %p109 = por %p107, %p108
      %s111 = sadd.s32 %s110, 1
      %p114 = scmp.eq.s32.totalorder %s13, 1
      %p115 = scmp.ne.s32.totalorder %s110, %s112
      %p116 = scmp.eq.s32.totalorder %s13, 0
      %p117 = por %p115, %p116
      %p118 = scmp.ne.s32.totalorder %s110, %s112
      %p119 = scmp.eq.s32.totalorder %s18, 1
      %p120 = por %p118, %p119
      %p121 = scmp.ne.s32.totalorder %s112, %s113
      %p122 = scmp.eq.s32.totalorder %s18, 0
      %p123 = por %p121, %p122
      %p124 = scmp.ne.s32.totalorder %s112, %s113
      %p125 = scmp.eq.s32.totalorder %s19, 1
      %p126 = por %p124, %p125
      %p128 = scmp.ne.s32.totalorder %s113, %s127
      %p129 = scmp.eq.s32.totalorder %s19, 0
      %p130 = por %p128, %p129
      %s132 = sadd.s32 %s131, 1
      %p135 = scmp.eq.s32.totalorder %s13, 1
      %p136 = scmp.ne.s32.totalorder %s131, %s133
      %p137 = scmp.eq.s32.totalorder %s13, 0
      %p138 = por %p136, %p137
      %p139 = scmp.ne.s32.totalorder %s131, %s133
      %p140 = scmp.eq.s32.totalorder %s18, 1
      %p141 = por %p139, %p140
      %p142 = scmp.ne.s32.totalorder %s133, %s134
      %p143 = scmp.eq.s32.totalorder %s18, 0
      %p144 = por %p142, %p143
      %p145 = scmp.ne.s32.totalorder %s133, %s134
      %p146 = scmp.eq.s32.totalorder %s19, 1
      %p147 = por %p145, %p146
      %p149 = scmp.ne.s32.totalorder %s134, %s148
      %p150 = scmp.eq.s32.totalorder %s19, 0
      %p151 = por %p149, %p150
      %s153 = sadd.s32 %s152, 1
      %p156 = scmp.eq.s32.totalorder %s13, 1
      %p157 = scmp.ne.s32.totalorder %s152, %s154
      %p158 = scmp.eq.s32.totalorder %s13, 0
      %p159 = por %p157, %p158
      %p160 = scmp.ne.s32.totalorder %s152, %s154
      %p161 = scmp.eq.s32.totalorder %s18, 1
      %p162 = por %p160, %p161
      %p163 = scmp.ne.s32.totalorder %s154, %s155
      %p164 = scmp.eq.s32.totalorder %s18, 0
      %p165 = por %p163, %p164
      %p166 = scmp.ne.s32.totalorder %s154, %s155
      %p167 = scmp.eq.s32.totalorder %s19, 1
      %p168 = por %p166, %p167
      %p170 = scmp.ne.s32.totalorder %s155, %s169
      %p171 = scmp.eq.s32.totalorder %s19, 0
      %p172 = por %p170, %p171
      %s173 = ssub.s32 %s13, %s20
      %p174 = scmp.eq.s32.totalorder %s173, 0
      %s176 = sadd.s32 %s175, 1
      %s177 = scalar_select %p174, %s175, %s176
      %p180 = pneg %p174
      %p181 = scmp.eq.s32.totalorder %s13, 1
      %p182 = por %p180, %p181
      %p183 = scmp.ne.s32.totalorder %s175, %s178
      %p184 = scmp.eq.s32.totalorder %s13, 0
      %p185 = por %p183, %p184
      %p186 = scmp.ne.s32.totalorder %s175, %s178
      %p187 = scmp.eq.s32.totalorder %s18, 1
      %p188 = por %p186, %p187
      %p189 = scmp.ne.s32.totalorder %s178, %s179
      %p190 = scmp.eq.s32.totalorder %s18, 0
      %p191 = por %p189, %p190
      %p192 = scmp.ne.s32.totalorder %s178, %s179
      %p193 = scmp.eq.s32.totalorder %s19, 1
      %p194 = por %p192, %p193
      %p196 = scmp.ne.s32.totalorder %s179, %s195
      %p197 = scmp.eq.s32.totalorder %s19, 0
      %p198 = por %p196, %p197
      %p199 = scmp.le.s32.totalorder 1, %s13
      %p200 = scmp.lt.s32.totalorder %s13, 3
      %p201 = pnand %p199, %p200
      %p202 = pneg %p201
      // Predicated region
      $region9: #{tpu_custom_call.1} parent=5 // pred_check
        _
      $region10: #{tpu_custom_call.1} parent=5 // pred_check_branch
        %204 = sbr.rel (%p201) target = $region12
      $region11: #{tpu_custom_call.1} parent=5 // pred_region
        %s205 = ssub.s32 %s13, 1
        // Predicated region
        $region13: #{tpu_custom_call.1} parent=11 // pred_check
          %p206 = pneg %p60
        $region14: #{tpu_custom_call.1} parent=11 // pred_check_branch
          %208 = sbr.rel (%p206) target = $region16
        $region15: #{tpu_custom_call.1} parent=11 // pred_region
          _
        $region16: #{tpu_custom_call.1} parent=11 // pred_fallthru
          _
        // Predicated region
        $region17: #{tpu_custom_call.1} parent=11 // pred_check
          %p209 = pneg %p81
        $region18: #{tpu_custom_call.1} parent=11 // pred_check_branch
          %211 = sbr.rel (%p209) target = $region20
        $region19: #{tpu_custom_call.1} parent=11 // pred_region
          _
        $region20: #{tpu_custom_call.1} parent=11 // pred_fallthru
          _
        // Predicated region
        $region21: #{tpu_custom_call.1} parent=11 // pred_check
          %p212 = pneg %p102
        $region22: #{tpu_custom_call.1} parent=11 // pred_check_branch
          %214 = sbr.rel (%p212) target = $region24
        $region23: #{tpu_custom_call.1} parent=11 // pred_region
          _
        $region24: #{tpu_custom_call.1} parent=11 // pred_fallthru
          _
        // Predicated region
        $region25: #{tpu_custom_call.1} parent=11 // pred_check
          %p215 = pneg %p123
        $region26: #{tpu_custom_call.1} parent=11 // pred_check_branch
          %217 = sbr.rel (%p215) target = $region28
        $region27: #{tpu_custom_call.1} parent=11 // pred_region
          _
        $region28: #{tpu_custom_call.1} parent=11 // pred_fallthru
          _
        // Predicated region
        $region29: #{tpu_custom_call.1} parent=11 // pred_check
          %p218 = pneg %p144
        $region30: #{tpu_custom_call.1} parent=11 // pred_check_branch
          %220 = sbr.rel (%p218) target = $region32
        $region31: #{tpu_custom_call.1} parent=11 // pred_region
          _
        $region32: #{tpu_custom_call.1} parent=11 // pred_fallthru
          _
        // Predicated region
        $region33: #{tpu_custom_call.1} parent=11 // pred_check
          %p221 = pneg %p165
        $region34: #{tpu_custom_call.1} parent=11 // pred_check_branch
          %223 = sbr.rel (%p221) target = $region36
        $region35: #{tpu_custom_call.1} parent=11 // pred_region
          _
        $region36: #{tpu_custom_call.1} parent=11 // pred_fallthru
          _
      $region12: #{tpu_custom_call.1} parent=5 // pred_fallthru
        _
      %p224 = scmp.lt.s32.totalorder %s13, 2
      // Predicated region
      $region37: #{tpu_custom_call.1} parent=5 // pred_check
        %p225 = pneg %p224
      $region38: #{tpu_custom_call.1} parent=5 // pred_check_branch
        %227 = sbr.rel (%p225) target = $region40
      $region39: #{tpu_custom_call.1} parent=5 // pred_region
        // Predicated region
        $region41: #{tpu_custom_call.1} parent=39 // pred_check
          %p228 = pneg %p33
        $region42: #{tpu_custom_call.1} parent=39 // pred_check_branch
          %230 = sbr.rel (%p228) target = $region44
        $region43: #{tpu_custom_call.1} parent=39 // pred_region
          %s231 = smul.u32 64, %s13
          %s232 = ssub.s32 125, %s231
          %p233 = scmp.lt.s32.totalorder %s232, 64
          %s234 = scalar_select %p233, %s232, 64
          %s235 = smul.u32 128, %s234
          %p236 = scmp.lt.s32.totalorder %s231, 124
          %s237 = scalar_select %p236, %s231, 124
          %s238 = smul.addr %s237, 8
          %s239 = scalar_lea.vmem %s0, %s238
          %s240 = smul.u32 64, %s13
          %s241 = ssub.s32 125, %s240
          %p242 = scmp.lt.s32.totalorder %s241, 64
          %s243 = scalar_select %p242, %s241, 64
          %s244 = smul.u32 128, %s243
        $region44: #{tpu_custom_call.1} parent=39 // pred_fallthru
          _
      $region40: #{tpu_custom_call.1} parent=5 // pred_fallthru
        _
      %p245 = scmp.le.s32.totalorder 1, %s13
      %p246 = scmp.lt.s32.totalorder %s13, 3
      %p247 = pnand %p245, %p246
      %p248 = pneg %p247
      // Predicated region
      $region45: #{tpu_custom_call.1} parent=5 // pred_check
        _
      $region46: #{tpu_custom_call.1} parent=5 // pred_check_branch
        %250 = sbr.rel (%p247) target = $region48
      $region47: #{tpu_custom_call.1} parent=5 // pred_region
        %s251 = ssub.s32 %s13, 1
        %s252 = smul.u32 64, %s18
        %s253 = ssub.s32 125, %s252
        %p254 = scmp.lt.s32.totalorder %s253, 64
        %s255 = scalar_select %p254, %s253, 64
        %s256 = smul.u32 128, %s255
        %p257 = scmp.lt.s32.totalorder %s252, 124
        %s258 = scalar_select %p257, %s252, 124
        %s259 = smul.addr %s258, 8
        %s260 = scalar_lea.vmem %s0, %s259
        %p261 = pneg %p39
        %p262 = pneg %p36
        %p263 = pneg %p60
        %p264 = pneg %p57
        %p265 = pneg %p81
        %p266 = pneg %p78
        %p267 = pneg %p102
        %p268 = pneg %p99
        %p269 = pneg %p123
        %p270 = pneg %p120
        %p271 = pneg %p144
        %p272 = pneg %p141
        %p273 = pneg %p165
        %p274 = pneg %p162
        %p275 = pneg %p191
        %p276 = pneg %p188
        %s277 = sand.u32 %s178, 1
        %s278 = sand.u32 %s178, 1
        %s279 = smul.addr %s278, 512
        %s280 = scalar_lea.vmem [#allocation2], %s279
        %s281 = smul.u32 64, %s18
        %s282 = ssub.s32 125, %s281
        %p283 = scmp.lt.s32.totalorder %s282, 64
        %s284 = scalar_select %p283, %s282, 64
        %s285 = smul.u32 128, %s284
        %p286 = scmp.lt.s32.totalorder %s281, 124
        %s287 = scalar_select %p286, %s281, 124
        %s288 = smul.addr %s287, 8
        %s289 = scalar_lea.vmem %s0, %s288
        %s290 = smul.u32 64, %s18
        %s291 = ssub.s32 125, %s290
        %p292 = scmp.lt.s32.totalorder %s291, 64
        %s293 = scalar_select %p292, %s291, 64
        %s294 = smul.u32 128, %s293
        %s295 = smul.u32 64, %s18
        %s296 = ssub.s32 125, %s295
        %p297 = scmp.lt.s32.totalorder %s296, 64
        %s298 = scalar_select %p297, %s296, 64
        %s299 = smul.u32 128, %s298
        %v301 = vld [vmem:[%s289] sm:$0xff]
        %v302 = vld [vmem:[%s289 + $0x8] sm:$0xff]
        %v303 = vld [vmem:[%s289 + $0x10] sm:$0xff]
        %v304 = vld [vmem:[%s289 + $0x18] sm:$0xff]
        %v305 = vld [vmem:[%s289 + $0x20] sm:$0xff]
        %v306 = vld [vmem:[%s289 + $0x28] sm:$0xff]
        %v307 = vld [vmem:[%s289 + $0x30] sm:$0xff]
        %v308 = vld [vmem:[%s289 + $0x38] sm:$0xff]
        %v309 = vld [vmem:[%s289 + $0x40] sm:$0xff]
        %v310 = vld [vmem:[%s289 + $0x48] sm:$0xff]
        %v311 = vld [vmem:[%s289 + $0x50] sm:$0xff]
        %v312 = vld [vmem:[%s289 + $0x58] sm:$0xff]
        %v313 = vld [vmem:[%s289 + $0x60] sm:$0xff]
        %v314 = vld [vmem:[%s289 + $0x68] sm:$0xff]
        %v315 = vld [vmem:[%s289 + $0x70] sm:$0xff]
        %v316 = vld [vmem:[%s289 + $0x78] sm:$0xff]
        %v317 = vld [vmem:[%s289 + $0x80] sm:$0xff]
        %v318 = vld [vmem:[%s289 + $0x88] sm:$0xff]
        %v319 = vld [vmem:[%s289 + $0x90] sm:$0xff]
        %v320 = vld [vmem:[%s289 + $0x98] sm:$0xff]
        %v321 = vld [vmem:[%s289 + $0xa0] sm:$0xff]
        %v322 = vld [vmem:[%s289 + $0xa8] sm:$0xff]
        %v323 = vld [vmem:[%s289 + $0xb0] sm:$0xff]
        %v324 = vld [vmem:[%s289 + $0xb8] sm:$0xff]
        %v325 = vld [vmem:[%s289 + $0xc0] sm:$0xff]
        %v326 = vld [vmem:[%s289 + $0xc8] sm:$0xff]
        %v327 = vld [vmem:[%s289 + $0xd0] sm:$0xff]
        %v328 = vld [vmem:[%s289 + $0xd8] sm:$0xff]
        %v329 = vld [vmem:[%s289 + $0xe0] sm:$0xff]
        %v330 = vld [vmem:[%s289 + $0xe8] sm:$0xff]
        %v331 = vld [vmem:[%s289 + $0xf0] sm:$0xff]
        %v332 = vld [vmem:[%s289 + $0xf8] sm:$0xff]
        %v333 = vld [vmem:[%s289 + $0x100] sm:$0xff]
        %v334 = vld [vmem:[%s289 + $0x108] sm:$0xff]
        %v335 = vld [vmem:[%s289 + $0x110] sm:$0xff]
        %v336 = vld [vmem:[%s289 + $0x118] sm:$0xff]
        %v337 = vld [vmem:[%s289 + $0x120] sm:$0xff]
        %v338 = vld [vmem:[%s289 + $0x128] sm:$0xff]
        %v339 = vld [vmem:[%s289 + $0x130] sm:$0xff]
        %v340 = vld [vmem:[%s289 + $0x138] sm:$0xff]
        %v341 = vld [vmem:[%s289 + $0x140] sm:$0xff]
        %v342 = vld [vmem:[%s289 + $0x148] sm:$0xff]
        %v343 = vld [vmem:[%s289 + $0x150] sm:$0xff]
        %v344 = vld [vmem:[%s289 + $0x158] sm:$0xff]
        %v345 = vld [vmem:[%s289 + $0x160] sm:$0xff]
        %v346 = vld [vmem:[%s289 + $0x168] sm:$0xff]
        %v347 = vld [vmem:[%s289 + $0x170] sm:$0xff]
        %v348 = vld [vmem:[%s289 + $0x178] sm:$0xff]
        %v349 = vld [vmem:[%s289 + $0x180] sm:$0xff]
        %v350 = vld [vmem:[%s289 + $0x188] sm:$0xff]
        %v351 = vld [vmem:[%s289 + $0x190] sm:$0xff]
        %v352 = vld [vmem:[%s289 + $0x198] sm:$0xff]
        %v353 = vld [vmem:[%s289 + $0x1a0] sm:$0xff]
        %v354 = vld [vmem:[%s289 + $0x1a8] sm:$0xff]
        %v355 = vld [vmem:[%s289 + $0x1b0] sm:$0xff]
        %v356 = vld [vmem:[%s289 + $0x1b8] sm:$0xff]
        %v357 = vld [vmem:[%s289 + $0x1c0] sm:$0xff]
        %v358 = vld [vmem:[%s289 + $0x1c8] sm:$0xff]
        %v359 = vld [vmem:[%s289 + $0x1d0] sm:$0xff]
        %v360 = vld [vmem:[%s289 + $0x1d8] sm:$0xff]
        %v361 = vld [vmem:[%s289 + $0x1e0] sm:$0xff]
        %v362 = vld [vmem:[%s289 + $0x1e8] sm:$0xff]
        %v363 = vld [vmem:[%s289 + $0x1f0] sm:$0xff]
        %v364 = vld [vmem:[%s289 + $0x1f8] sm:$0xff]
        %v365 = vpack.c.bf16 %v302, %v301
        %v366 = vpack.c.bf16 %v304, %v303
        %v367 = vpack.c.bf16 %v306, %v305
        %v368 = vpack.c.bf16 %v308, %v307
        %v369 = vpack.c.bf16 %v310, %v309
        %v370 = vpack.c.bf16 %v312, %v311
        %v371 = vpack.c.bf16 %v314, %v313
        %v372 = vpack.c.bf16 %v316, %v315
        %v373 = vpack.c.bf16 %v318, %v317
        %v374 = vpack.c.bf16 %v320, %v319
        %v375 = vpack.c.bf16 %v322, %v321
        %v376 = vpack.c.bf16 %v324, %v323
        %v377 = vpack.c.bf16 %v326, %v325
        %v378 = vpack.c.bf16 %v328, %v327
        %v379 = vpack.c.bf16 %v330, %v329
        %v380 = vpack.c.bf16 %v332, %v331
        %v381 = vpack.c.bf16 %v334, %v333
        %v382 = vpack.c.bf16 %v336, %v335
        %v383 = vpack.c.bf16 %v338, %v337
        %v384 = vpack.c.bf16 %v340, %v339
        %v385 = vpack.c.bf16 %v342, %v341
        %v386 = vpack.c.bf16 %v344, %v343
        %v387 = vpack.c.bf16 %v346, %v345
        %v388 = vpack.c.bf16 %v348, %v347
        %v389 = vpack.c.bf16 %v350, %v349
        %v390 = vpack.c.bf16 %v352, %v351
        %v391 = vpack.c.bf16 %v354, %v353
        %v392 = vpack.c.bf16 %v356, %v355
        %v393 = vpack.c.bf16 %v358, %v357
        %v394 = vpack.c.bf16 %v360, %v359
        %v395 = vpack.c.bf16 %v362, %v361
        %v396 = vpack.c.bf16 %v364, %v363
        %v397 = vld [vmem:[%s1] sm:$0xf]
        %v398 = vld [vmem:[%s1 + $0x4] sm:$0xf]
        %v399 = vld [vmem:[%s1 + $0x8] sm:$0xf]
        %v400 = vld [vmem:[%s1 + $0xc] sm:$0xf]
        %v401 = vld [vmem:[%s1 + $0x10] sm:$0xf]
        %v402 = vld [vmem:[%s1 + $0x14] sm:$0xf]
        %v403 = vld [vmem:[%s1 + $0x18] sm:$0xf]
        %v404 = vld [vmem:[%s1 + $0x1c] sm:$0xf]
        %v405 = vld [vmem:[%s2] sm:$0x1]
        %v407 = vlaneseq
        %v408 = vshrl.u32 %v407, 7
        %v409 = vsub.s32 0, %v408
        %v410 = vrot.slane %v405, %v409
        %v420 = vunpack.c.l.b16 %v397
        %v421 = vunpack.c.l.b16 %v398
        %v422 = vunpack.c.l.b16 %v399
        %v423 = vunpack.c.l.b16 %v400
        %v424 = vunpack.c.l.b16 %v401
        %v425 = vunpack.c.l.b16 %v402
        %v426 = vunpack.c.l.b16 %v403
        %v427 = vunpack.c.l.b16 %v404
        %v428 = vpack.c.b16 %v421, %v420
        %v429 = vpack.c.b16 %v423, %v422
        %v430 = vpack.c.b16 %v425, %v424
        %v431 = vpack.c.b16 %v427, %v426
        %vm436 = vcmask 523264
        %v438 = vsel %vm436, %v365, 0
        %v441 = vsel %vm436, %v366, 0
        %v444 = vsel %vm436, %v367, 0
        %v447 = vsel %vm436, %v368, 0
        %v450 = vsel %vm436, %v369, 0
        %v453 = vsel %vm436, %v370, 0
        %v456 = vsel %vm436, %v371, 0
        %v459 = vsel %vm436, %v372, 0
        %v462 = vsel %vm436, %v373, 0
        %v465 = vsel %vm436, %v374, 0
        %v468 = vsel %vm436, %v375, 0
        %v471 = vsel %vm436, %v376, 0
        %v474 = vsel %vm436, %v377, 0
        %v477 = vsel %vm436, %v378, 0
        %v480 = vsel %vm436, %v379, 0
        %v483 = vsel %vm436, %v380, 0
        %v486 = vsel %vm436, %v381, 0
        %v489 = vsel %vm436, %v382, 0
        %v492 = vsel %vm436, %v383, 0
        %v495 = vsel %vm436, %v384, 0
        %v498 = vsel %vm436, %v385, 0
        %v501 = vsel %vm436, %v386, 0
        %v504 = vsel %vm436, %v387, 0
        %v507 = vsel %vm436, %v388, 0
        %v510 = vsel %vm436, %v389, 0
        %v513 = vsel %vm436, %v390, 0
        %v516 = vsel %vm436, %v391, 0
        %v519 = vsel %vm436, %v392, 0
        %v522 = vsel %vm436, %v393, 0
        %v525 = vsel %vm436, %v394, 0
        %v528 = vsel %vm436, %v395, 0
        %v531 = vsel %vm436, %v396, 0
        %533 = vmatprep.subr.bf16.mxu0 0
        %534 = vmatpush1.bf16.msra.mxu0 0
        %535 = vmatprep.subr.bf16.mxu0 0
        %536 = vmatpush1.bf16.msra.mxu0 0
        %537 = vmatprep.subr.bf16.mxu0 0
        %538 = vmatpush1.bf16.msra.mxu0 0
        %539 = vmatprep.subr.bf16.mxu0 0
        %540 = vmatpush1.bf16.msra.mxu0 0
        %541 = vmatprep.subr.bf16.mxu0 0
        %542 = vmatpush1.bf16.msra.mxu0 %v431
        %543 = vmatprep.subr.bf16.mxu0 0
        %544 = vmatpush1.bf16.msra.mxu0 %v430
        %545 = vmatprep.subr.bf16.mxu0 0
        %546 = vmatpush1.bf16.msra.mxu0 %v429
        %547 = vmatprep.subr.bf16.mxu0 0
        %548 = vmatpush1.bf16.msra.mxu0 %v428
        %549 = vmatprep.subr.bf16.mxu0 0
        %550 = vmatpush2.bf16.msra.mxu0 0
        %551 = vmatprep.subr.bf16.mxu0 0
        %552 = vmatpush2.bf16.msra.mxu0 0
        %553 = vmatprep.subr.bf16.mxu0 0
        %554 = vmatpush2.bf16.msra.mxu0 0
        %555 = vmatprep.subr.bf16.mxu0 0
        %556 = vmatpush2.bf16.msra.mxu0 0
        %557 = vmatprep.subr.bf16.mxu0 0
        %558 = vmatpush2.bf16.msra.mxu0 0
        %559 = vmatprep.subr.bf16.mxu0 0
        %560 = vmatpush2.bf16.msra.mxu0 0
        %561 = vmatprep.subr.bf16.mxu0 0
        %562 = vmatpush2.bf16.msra.mxu0 0
        %563 = vmatprep.subr.bf16.mxu0 0
        %564 = vmatpush2.bf16.msra.mxu0 0
        %565 = vmatprep.mubr.bf16.mxu0 0
        %566 = vmatmul.mubr.bf16.gmra.mxu0 %v438
        %v567 = vpop.f32.mrf.mxu0
        %v568 = vadd.f32 %v410, %v567
        %v569 = vpop.f32.mrf.mxu0
        %v570 = vpop.f32.mrf.mxu0
        %v571 = vadd.f32 %v410, %v570
        %v572 = vpop.f32.mrf.mxu0
        %573 = vmatprep.mubr.bf16.mxu0 0
        %574 = vmatmul.mubr.bf16.gmra.mxu0 %v441
        %v575 = vpop.f32.mrf.mxu0
        %v576 = vadd.f32 %v410, %v575
        %v577 = vpop.f32.mrf.mxu0
        %v578 = vpop.f32.mrf.mxu0
        %v579 = vadd.f32 %v410, %v578
        %v580 = vpop.f32.mrf.mxu0
        %581 = vmatprep.mubr.bf16.mxu0 0
        %582 = vmatmul.mubr.bf16.gmra.mxu0 %v444
        %v583 = vpop.f32.mrf.mxu0
        %v584 = vadd.f32 %v410, %v583
        %v585 = vpop.f32.mrf.mxu0
        %v586 = vpop.f32.mrf.mxu0
        %v587 = vadd.f32 %v410, %v586
        %v588 = vpop.f32.mrf.mxu0
        %589 = vmatprep.mubr.bf16.mxu0 0
        %590 = vmatmul.mubr.bf16.gmra.mxu0 %v447
        %v591 = vpop.f32.mrf.mxu0
        %v592 = vadd.f32 %v410, %v591
        %v593 = vpop.f32.mrf.mxu0
        %v594 = vpop.f32.mrf.mxu0
        %v595 = vadd.f32 %v410, %v594
        %v596 = vpop.f32.mrf.mxu0
        %597 = vmatprep.mubr.bf16.mxu0 0
        %598 = vmatmul.mubr.bf16.gmra.mxu0 %v450
        %v599 = vpop.f32.mrf.mxu0
        %v600 = vadd.f32 %v410, %v599
        %v601 = vpop.f32.mrf.mxu0
        %v602 = vpop.f32.mrf.mxu0
        %v603 = vadd.f32 %v410, %v602
        %v604 = vpop.f32.mrf.mxu0
        %605 = vmatprep.mubr.bf16.mxu0 0
        %606 = vmatmul.mubr.bf16.gmra.mxu0 %v453
        %v607 = vpop.f32.mrf.mxu0
        %v608 = vadd.f32 %v410, %v607
        %v609 = vpop.f32.mrf.mxu0
        %v610 = vpop.f32.mrf.mxu0
        %v611 = vadd.f32 %v410, %v610
        %v612 = vpop.f32.mrf.mxu0
        %613 = vmatprep.mubr.bf16.mxu0 0
        %614 = vmatmul.mubr.bf16.gmra.mxu0 %v456
        %v615 = vpop.f32.mrf.mxu0
        %v616 = vadd.f32 %v410, %v615
        %v617 = vpop.f32.mrf.mxu0
        %v618 = vpop.f32.mrf.mxu0
        %v619 = vadd.f32 %v410, %v618
        %v620 = vpop.f32.mrf.mxu0
        %621 = vmatprep.mubr.bf16.mxu0 0
        %622 = vmatmul.mubr.bf16.gmra.mxu0 %v459
        %v623 = vpop.f32.mrf.mxu0
        %v624 = vadd.f32 %v410, %v623
        %v625 = vpop.f32.mrf.mxu0
        %v626 = vpop.f32.mrf.mxu0
        %v627 = vadd.f32 %v410, %v626
        %v628 = vpop.f32.mrf.mxu0
        %629 = vmatprep.mubr.bf16.mxu0 0
        %630 = vmatmul.mubr.bf16.gmra.mxu0 %v462
        %v631 = vpop.f32.mrf.mxu0
        %v632 = vadd.f32 %v410, %v631
        %v633 = vpop.f32.mrf.mxu0
        %v634 = vpop.f32.mrf.mxu0
        %v635 = vadd.f32 %v410, %v634
        %v636 = vpop.f32.mrf.mxu0
        %637 = vmatprep.mubr.bf16.mxu0 0
        %638 = vmatmul.mubr.bf16.gmra.mxu0 %v465
        %v639 = vpop.f32.mrf.mxu0
        %v640 = vadd.f32 %v410, %v639
        %v641 = vpop.f32.mrf.mxu0
        %v642 = vpop.f32.mrf.mxu0
        %v643 = vadd.f32 %v410, %v642
        %v644 = vpop.f32.mrf.mxu0
        %645 = vmatprep.mubr.bf16.mxu0 0
        %646 = vmatmul.mubr.bf16.gmra.mxu0 %v468
        %v647 = vpop.f32.mrf.mxu0
        %v648 = vadd.f32 %v410, %v647
        %v649 = vpop.f32.mrf.mxu0
        %v650 = vpop.f32.mrf.mxu0
        %v651 = vadd.f32 %v410, %v650
        %v652 = vpop.f32.mrf.mxu0
        %653 = vmatprep.mubr.bf16.mxu0 0
        %654 = vmatmul.mubr.bf16.gmra.mxu0 %v471
        %v655 = vpop.f32.mrf.mxu0
        %v656 = vadd.f32 %v410, %v655
        %v657 = vpop.f32.mrf.mxu0
        %v658 = vpop.f32.mrf.mxu0
        %v659 = vadd.f32 %v410, %v658
        %v660 = vpop.f32.mrf.mxu0
        %661 = vmatprep.mubr.bf16.mxu0 0
        %662 = vmatmul.mubr.bf16.gmra.mxu0 %v474
        %v663 = vpop.f32.mrf.mxu0
        %v664 = vadd.f32 %v410, %v663
        %v665 = vpop.f32.mrf.mxu0
        %v666 = vpop.f32.mrf.mxu0
        %v667 = vadd.f32 %v410, %v666
        %v668 = vpop.f32.mrf.mxu0
        %669 = vmatprep.mubr.bf16.mxu0 0
        %670 = vmatmul.mubr.bf16.gmra.mxu0 %v477
        %v671 = vpop.f32.mrf.mxu0
        %v672 = vadd.f32 %v410, %v671
        %v673 = vpop.f32.mrf.mxu0
        %v674 = vpop.f32.mrf.mxu0
        %v675 = vadd.f32 %v410, %v674
        %v676 = vpop.f32.mrf.mxu0
        %677 = vmatprep.mubr.bf16.mxu0 0
        %678 = vmatmul.mubr.bf16.gmra.mxu0 %v480
        %v679 = vpop.f32.mrf.mxu0
        %v680 = vadd.f32 %v410, %v679
        %v681 = vpop.f32.mrf.mxu0
        %v682 = vpop.f32.mrf.mxu0
        %v683 = vadd.f32 %v410, %v682
        %v684 = vpop.f32.mrf.mxu0
        %685 = vmatprep.mubr.bf16.mxu0 0
        %686 = vmatmul.mubr.bf16.gmra.mxu0 %v483
        %v687 = vpop.f32.mrf.mxu0
        %v688 = vadd.f32 %v410, %v687
        %v689 = vpop.f32.mrf.mxu0
        %v690 = vpop.f32.mrf.mxu0
        %v691 = vadd.f32 %v410, %v690
        %v692 = vpop.f32.mrf.mxu0
        %693 = vmatprep.mubr.bf16.mxu0 0
        %694 = vmatmul.mubr.bf16.gmra.mxu0 %v486
        %v695 = vpop.f32.mrf.mxu0
        %v696 = vadd.f32 %v410, %v695
        %v697 = vpop.f32.mrf.mxu0
        %v698 = vpop.f32.mrf.mxu0
        %v699 = vadd.f32 %v410, %v698
        %v700 = vpop.f32.mrf.mxu0
        %701 = vmatprep.mubr.bf16.mxu0 0
        %702 = vmatmul.mubr.bf16.gmra.mxu0 %v489
        %v703 = vpop.f32.mrf.mxu0
        %v704 = vadd.f32 %v410, %v703
        %v705 = vpop.f32.mrf.mxu0
        %v706 = vpop.f32.mrf.mxu0
        %v707 = vadd.f32 %v410, %v706
        %v708 = vpop.f32.mrf.mxu0
        %709 = vmatprep.mubr.bf16.mxu0 0
        %710 = vmatmul.mubr.bf16.gmra.mxu0 %v492
        %v711 = vpop.f32.mrf.mxu0
        %v712 = vadd.f32 %v410, %v711
        %v713 = vpop.f32.mrf.mxu0
        %v714 = vpop.f32.mrf.mxu0
        %v715 = vadd.f32 %v410, %v714
        %v716 = vpop.f32.mrf.mxu0
        %717 = vmatprep.mubr.bf16.mxu0 0
        %718 = vmatmul.mubr.bf16.gmra.mxu0 %v495
        %v719 = vpop.f32.mrf.mxu0
        %v720 = vadd.f32 %v410, %v719
        %v721 = vpop.f32.mrf.mxu0
        %v722 = vpop.f32.mrf.mxu0
        %v723 = vadd.f32 %v410, %v722
        %v724 = vpop.f32.mrf.mxu0
        %725 = vmatprep.mubr.bf16.mxu0 0
        %726 = vmatmul.mubr.bf16.gmra.mxu0 %v498
        %v727 = vpop.f32.mrf.mxu0
        %v728 = vadd.f32 %v410, %v727
        %v729 = vpop.f32.mrf.mxu0
        %v730 = vpop.f32.mrf.mxu0
        %v731 = vadd.f32 %v410, %v730
        %v732 = vpop.f32.mrf.mxu0
        %733 = vmatprep.mubr.bf16.mxu0 0
        %734 = vmatmul.mubr.bf16.gmra.mxu0 %v501
        %v735 = vpop.f32.mrf.mxu0
        %v736 = vadd.f32 %v410, %v735
        %v737 = vpop.f32.mrf.mxu0
        %v738 = vpop.f32.mrf.mxu0
        %v739 = vadd.f32 %v410, %v738
        %v740 = vpop.f32.mrf.mxu0
        %741 = vmatprep.mubr.bf16.mxu0 0
        %742 = vmatmul.mubr.bf16.gmra.mxu0 %v504
        %v743 = vpop.f32.mrf.mxu0
        %v744 = vadd.f32 %v410, %v743
        %v745 = vpop.f32.mrf.mxu0
        %v746 = vpop.f32.mrf.mxu0
        %v747 = vadd.f32 %v410, %v746
        %v748 = vpop.f32.mrf.mxu0
        %749 = vmatprep.mubr.bf16.mxu0 0
        %750 = vmatmul.mubr.bf16.gmra.mxu0 %v507
        %v751 = vpop.f32.mrf.mxu0
        %v752 = vadd.f32 %v410, %v751
        %v753 = vpop.f32.mrf.mxu0
        %v754 = vpop.f32.mrf.mxu0
        %v755 = vadd.f32 %v410, %v754
        %v756 = vpop.f32.mrf.mxu0
        %757 = vmatprep.mubr.bf16.mxu0 0
        %758 = vmatmul.mubr.bf16.gmra.mxu0 %v510
        %v759 = vpop.f32.mrf.mxu0
        %v760 = vadd.f32 %v410, %v759
        %v761 = vpop.f32.mrf.mxu0
        %v762 = vpop.f32.mrf.mxu0
        %v763 = vadd.f32 %v410, %v762
        %v764 = vpop.f32.mrf.mxu0
        %765 = vmatprep.mubr.bf16.mxu0 0
        %766 = vmatmul.mubr.bf16.gmra.mxu0 %v513
        %v767 = vpop.f32.mrf.mxu0
        %v768 = vadd.f32 %v410, %v767
        %v769 = vpop.f32.mrf.mxu0
        %v770 = vpop.f32.mrf.mxu0
        %v771 = vadd.f32 %v410, %v770
        %v772 = vpop.f32.mrf.mxu0
        %773 = vmatprep.mubr.bf16.mxu0 0
        %774 = vmatmul.mubr.bf16.gmra.mxu0 %v516
        %v775 = vpop.f32.mrf.mxu0
        %v776 = vadd.f32 %v410, %v775
        %v777 = vpop.f32.mrf.mxu0
        %v778 = vpop.f32.mrf.mxu0
        %v779 = vadd.f32 %v410, %v778
        %v780 = vpop.f32.mrf.mxu0
        %781 = vmatprep.mubr.bf16.mxu0 0
        %782 = vmatmul.mubr.bf16.gmra.mxu0 %v519
        %v783 = vpop.f32.mrf.mxu0
        %v784 = vadd.f32 %v410, %v783
        %v785 = vpop.f32.mrf.mxu0
        %v786 = vpop.f32.mrf.mxu0
        %v787 = vadd.f32 %v410, %v786
        %v788 = vpop.f32.mrf.mxu0
        %789 = vmatprep.mubr.bf16.mxu0 0
        %790 = vmatmul.mubr.bf16.gmra.mxu0 %v522
        %v791 = vpop.f32.mrf.mxu0
        %v792 = vadd.f32 %v410, %v791
        %v793 = vpop.f32.mrf.mxu0
        %v794 = vpop.f32.mrf.mxu0
        %v795 = vadd.f32 %v410, %v794
        %v796 = vpop.f32.mrf.mxu0
        %797 = vmatprep.mubr.bf16.mxu0 0
        %798 = vmatmul.mubr.bf16.gmra.mxu0 %v525
        %v799 = vpop.f32.mrf.mxu0
        %v800 = vadd.f32 %v410, %v799
        %v801 = vpop.f32.mrf.mxu0
        %v802 = vpop.f32.mrf.mxu0
        %v803 = vadd.f32 %v410, %v802
        %v804 = vpop.f32.mrf.mxu0
        %805 = vmatprep.mubr.bf16.mxu0 0
        %806 = vmatmul.mubr.bf16.gmra.mxu0 %v528
        %v807 = vpop.f32.mrf.mxu0
        %v808 = vadd.f32 %v410, %v807
        %v809 = vpop.f32.mrf.mxu0
        %v810 = vpop.f32.mrf.mxu0
        %v811 = vadd.f32 %v410, %v810
        %v812 = vpop.f32.mrf.mxu0
        %813 = vmatprep.mubr.bf16.mxu0 0
        %814 = vmatmul.mubr.bf16.gmra.mxu0 %v531
        %v815 = vpop.f32.mrf.mxu0
        %v816 = vadd.f32 %v410, %v815
        %v817 = vpop.f32.mrf.mxu0
        %v818 = vpop.f32.mrf.mxu0
        %v819 = vadd.f32 %v410, %v818
        %v820 = vpop.f32.mrf.mxu0
        %821 = vdwg.mxu0
        %v822 = vmax.f32 %v568, 0.0
        %v823 = vmax.f32 %v571, 0.0
        %v824 = vmax.f32 %v576, 0.0
        %v825 = vmax.f32 %v579, 0.0
        %v826 = vmax.f32 %v584, 0.0
        %v827 = vmax.f32 %v587, 0.0
        %v828 = vmax.f32 %v592, 0.0
        %v829 = vmax.f32 %v595, 0.0
        %v830 = vmax.f32 %v600, 0.0
        %v831 = vmax.f32 %v603, 0.0
        %v832 = vmax.f32 %v608, 0.0
        %v833 = vmax.f32 %v611, 0.0
        %v834 = vmax.f32 %v616, 0.0
        %v835 = vmax.f32 %v619, 0.0
        %v836 = vmax.f32 %v624, 0.0
        %v837 = vmax.f32 %v627, 0.0
        %v838 = vmax.f32 %v632, 0.0
        %v839 = vmax.f32 %v635, 0.0
        %v840 = vmax.f32 %v640, 0.0
        %v841 = vmax.f32 %v643, 0.0
        %v842 = vmax.f32 %v648, 0.0
        %v843 = vmax.f32 %v651, 0.0
        %v844 = vmax.f32 %v656, 0.0
        %v845 = vmax.f32 %v659, 0.0
        %v846 = vmax.f32 %v664, 0.0
        %v847 = vmax.f32 %v667, 0.0
        %v848 = vmax.f32 %v672, 0.0
        %v849 = vmax.f32 %v675, 0.0
        %v850 = vmax.f32 %v680, 0.0
        %v851 = vmax.f32 %v683, 0.0
        %v852 = vmax.f32 %v688, 0.0
        %v853 = vmax.f32 %v691, 0.0
        %v854 = vmax.f32 %v696, 0.0
        %v855 = vmax.f32 %v699, 0.0
        %v856 = vmax.f32 %v704, 0.0
        %v857 = vmax.f32 %v707, 0.0
        %v858 = vmax.f32 %v712, 0.0
        %v859 = vmax.f32 %v715, 0.0
        %v860 = vmax.f32 %v720, 0.0
        %v861 = vmax.f32 %v723, 0.0
        %v862 = vmax.f32 %v728, 0.0
        %v863 = vmax.f32 %v731, 0.0
        %v864 = vmax.f32 %v736, 0.0
        %v865 = vmax.f32 %v739, 0.0
        %v866 = vmax.f32 %v744, 0.0
        %v867 = vmax.f32 %v747, 0.0
        %v868 = vmax.f32 %v752, 0.0
        %v869 = vmax.f32 %v755, 0.0
        %v870 = vmax.f32 %v760, 0.0
        %v871 = vmax.f32 %v763, 0.0
        %v872 = vmax.f32 %v768, 0.0
        %v873 = vmax.f32 %v771, 0.0
        %v874 = vmax.f32 %v776, 0.0
        %v875 = vmax.f32 %v779, 0.0
        %v876 = vmax.f32 %v784, 0.0
        %v877 = vmax.f32 %v787, 0.0
        %v878 = vmax.f32 %v792, 0.0
        %v879 = vmax.f32 %v795, 0.0
        %v880 = vmax.f32 %v800, 0.0
        %v881 = vmax.f32 %v803, 0.0
        %v882 = vmax.f32 %v808, 0.0
        %v883 = vmax.f32 %v811, 0.0
        %v884 = vmax.f32 %v816, 0.0
        %v885 = vmax.f32 %v819, 0.0
        %v886 = vpack.c.bf16 %v823, %v822
        %v887 = vpack.c.bf16 %v825, %v824
        %v888 = vpack.c.bf16 %v827, %v826
        %v889 = vpack.c.bf16 %v829, %v828
        %v890 = vpack.c.bf16 %v831, %v830
        %v891 = vpack.c.bf16 %v833, %v832
        %v892 = vpack.c.bf16 %v835, %v834
        %v893 = vpack.c.bf16 %v837, %v836
        %v894 = vpack.c.bf16 %v839, %v838
        %v895 = vpack.c.bf16 %v841, %v840
        %v896 = vpack.c.bf16 %v843, %v842
        %v897 = vpack.c.bf16 %v845, %v844
        %v898 = vpack.c.bf16 %v847, %v846
        %v899 = vpack.c.bf16 %v849, %v848
        %v900 = vpack.c.bf16 %v851, %v850
        %v901 = vpack.c.bf16 %v853, %v852
        %v902 = vpack.c.bf16 %v855, %v854
        %v903 = vpack.c.bf16 %v857, %v856
        %v904 = vpack.c.bf16 %v859, %v858
        %v905 = vpack.c.bf16 %v861, %v860
        %v906 = vpack.c.bf16 %v863, %v862
        %v907 = vpack.c.bf16 %v865, %v864
        %v908 = vpack.c.bf16 %v867, %v866
        %v909 = vpack.c.bf16 %v869, %v868
        %v910 = vpack.c.bf16 %v871, %v870
        %v911 = vpack.c.bf16 %v873, %v872
        %v912 = vpack.c.bf16 %v875, %v874
        %v913 = vpack.c.bf16 %v877, %v876
        %v914 = vpack.c.bf16 %v879, %v878
        %v915 = vpack.c.bf16 %v881, %v880
        %v916 = vpack.c.bf16 %v883, %v882
        %v917 = vpack.c.bf16 %v885, %v884
        %v918 = vld [vmem:[%s3] sm:$0xf]
        %v919 = vld [vmem:[%s3 + $0x4] sm:$0xf]
        %v920 = vld [vmem:[%s3 + $0x8] sm:$0xf]
        %v921 = vld [vmem:[%s3 + $0xc] sm:$0xf]
        %v922 = vld [vmem:[%s3 + $0x10] sm:$0xf]
        %v923 = vld [vmem:[%s3 + $0x14] sm:$0xf]
        %v924 = vld [vmem:[%s3 + $0x18] sm:$0xf]
        %v925 = vld [vmem:[%s3 + $0x1c] sm:$0xf]
        %v926 = vld [vmem:[%s4] sm:$0x1]
        %v928 = vlaneseq
        %v929 = vshrl.u32 %v928, 7
        %v930 = vsub.s32 0, %v929
        %v931 = vrot.slane %v926, %v930
        %v941 = vunpack.c.l.b16 %v918
        %v942 = vunpack.c.l.b16 %v919
        %v943 = vunpack.c.l.b16 %v920
        %v944 = vunpack.c.l.b16 %v921
        %v945 = vunpack.c.l.b16 %v922
        %v946 = vunpack.c.l.b16 %v923
        %v947 = vunpack.c.l.b16 %v924
        %v948 = vunpack.c.l.b16 %v925
        %v949 = vpack.c.b16 %v942, %v941
        %v950 = vpack.c.b16 %v944, %v943
        %v951 = vpack.c.b16 %v946, %v945
        %v952 = vpack.c.b16 %v948, %v947
        %v958 = vsel %vm436, %v886, 0
        %v961 = vsel %vm436, %v887, 0
        %v964 = vsel %vm436, %v888, 0
        %v967 = vsel %vm436, %v889, 0
        %v970 = vsel %vm436, %v890, 0
        %v973 = vsel %vm436, %v891, 0
        %v976 = vsel %vm436, %v892, 0
        %v979 = vsel %vm436, %v893, 0
        %v982 = vsel %vm436, %v894, 0
        %v985 = vsel %vm436, %v895, 0
        %v988 = vsel %vm436, %v896, 0
        %v991 = vsel %vm436, %v897, 0
        %v994 = vsel %vm436, %v898, 0
        %v997 = vsel %vm436, %v899, 0
        %v1000 = vsel %vm436, %v900, 0
        %v1003 = vsel %vm436, %v901, 0
        %v1006 = vsel %vm436, %v902, 0
        %v1009 = vsel %vm436, %v903, 0
        %v1012 = vsel %vm436, %v904, 0
        %v1015 = vsel %vm436, %v905, 0
        %v1018 = vsel %vm436, %v906, 0
        %v1021 = vsel %vm436, %v907, 0
        %v1024 = vsel %vm436, %v908, 0
        %v1027 = vsel %vm436, %v909, 0
        %v1030 = vsel %vm436, %v910, 0
        %v1033 = vsel %vm436, %v911, 0
        %v1036 = vsel %vm436, %v912, 0
        %v1039 = vsel %vm436, %v913, 0
        %v1042 = vsel %vm436, %v914, 0
        %v1045 = vsel %vm436, %v915, 0
        %v1048 = vsel %vm436, %v916, 0
        %v1051 = vsel %vm436, %v917, 0
        %1053 = vmatprep.subr.bf16.mxu0 0
        %1054 = vmatpush1.bf16.msra.mxu0 0
        %1055 = vmatprep.subr.bf16.mxu0 0
        %1056 = vmatpush1.bf16.msra.mxu0 0
        %1057 = vmatprep.subr.bf16.mxu0 0
        %1058 = vmatpush1.bf16.msra.mxu0 0
        %1059 = vmatprep.subr.bf16.mxu0 0
        %1060 = vmatpush1.bf16.msra.mxu0 0
        %1061 = vmatprep.subr.bf16.mxu0 0
        %1062 = vmatpush1.bf16.msra.mxu0 %v952
        %1063 = vmatprep.subr.bf16.mxu0 0
        %1064 = vmatpush1.bf16.msra.mxu0 %v951
        %1065 = vmatprep.subr.bf16.mxu0 0
        %1066 = vmatpush1.bf16.msra.mxu0 %v950
        %1067 = vmatprep.subr.bf16.mxu0 0
        %1068 = vmatpush1.bf16.msra.mxu0 %v949
        %1069 = vmatprep.subr.bf16.mxu0 0
        %1070 = vmatpush2.bf16.msra.mxu0 0
        %1071 = vmatprep.subr.bf16.mxu0 0
        %1072 = vmatpush2.bf16.msra.mxu0 0
        %1073 = vmatprep.subr.bf16.mxu0 0
        %1074 = vmatpush2.bf16.msra.mxu0 0
        %1075 = vmatprep.subr.bf16.mxu0 0
        %1076 = vmatpush2.bf16.msra.mxu0 0
        %1077 = vmatprep.subr.bf16.mxu0 0
        %1078 = vmatpush2.bf16.msra.mxu0 0
        %1079 = vmatprep.subr.bf16.mxu0 0
        %1080 = vmatpush2.bf16.msra.mxu0 0
        %1081 = vmatprep.subr.bf16.mxu0 0
        %1082 = vmatpush2.bf16.msra.mxu0 0
        %1083 = vmatprep.subr.bf16.mxu0 0
        %1084 = vmatpush2.bf16.msra.mxu0 0
        %1085 = vmatprep.mubr.bf16.mxu0 0
        %1086 = vmatmul.mubr.bf16.gmra.mxu0 %v958
        %v1087 = vpop.f32.mrf.mxu0
        %v1088 = vadd.f32 %v931, %v1087
        %v1089 = vpop.f32.mrf.mxu0
        %v1090 = vpop.f32.mrf.mxu0
        %v1091 = vadd.f32 %v931, %v1090
        %v1092 = vpop.f32.mrf.mxu0
        %1093 = vmatprep.mubr.bf16.mxu0 0
        %1094 = vmatmul.mubr.bf16.gmra.mxu0 %v961
        %v1095 = vpop.f32.mrf.mxu0
        %v1096 = vadd.f32 %v931, %v1095
        %v1097 = vpop.f32.mrf.mxu0
        %v1098 = vpop.f32.mrf.mxu0
        %v1099 = vadd.f32 %v931, %v1098
        %v1100 = vpop.f32.mrf.mxu0
        %1101 = vmatprep.mubr.bf16.mxu0 0
        %1102 = vmatmul.mubr.bf16.gmra.mxu0 %v964
        %v1103 = vpop.f32.mrf.mxu0
        %v1104 = vadd.f32 %v931, %v1103
        %v1105 = vpop.f32.mrf.mxu0
        %v1106 = vpop.f32.mrf.mxu0
        %v1107 = vadd.f32 %v931, %v1106
        %v1108 = vpop.f32.mrf.mxu0
        %1109 = vmatprep.mubr.bf16.mxu0 0
        %1110 = vmatmul.mubr.bf16.gmra.mxu0 %v967
        %v1111 = vpop.f32.mrf.mxu0
        %v1112 = vadd.f32 %v931, %v1111
        %v1113 = vpop.f32.mrf.mxu0
        %v1114 = vpop.f32.mrf.mxu0
        %v1115 = vadd.f32 %v931, %v1114
        %v1116 = vpop.f32.mrf.mxu0
        %1117 = vmatprep.mubr.bf16.mxu0 0
        %1118 = vmatmul.mubr.bf16.gmra.mxu0 %v970
        %v1119 = vpop.f32.mrf.mxu0
        %v1120 = vadd.f32 %v931, %v1119
        %v1121 = vpop.f32.mrf.mxu0
        %v1122 = vpop.f32.mrf.mxu0
        %v1123 = vadd.f32 %v931, %v1122
        %v1124 = vpop.f32.mrf.mxu0
        %1125 = vmatprep.mubr.bf16.mxu0 0
        %1126 = vmatmul.mubr.bf16.gmra.mxu0 %v973
        %v1127 = vpop.f32.mrf.mxu0
        %v1128 = vadd.f32 %v931, %v1127
        %v1129 = vpop.f32.mrf.mxu0
        %v1130 = vpop.f32.mrf.mxu0
        %v1131 = vadd.f32 %v931, %v1130
        %v1132 = vpop.f32.mrf.mxu0
        %1133 = vmatprep.mubr.bf16.mxu0 0
        %1134 = vmatmul.mubr.bf16.gmra.mxu0 %v976
        %v1135 = vpop.f32.mrf.mxu0
        %v1136 = vadd.f32 %v931, %v1135
        %v1137 = vpop.f32.mrf.mxu0
        %v1138 = vpop.f32.mrf.mxu0
        %v1139 = vadd.f32 %v931, %v1138
        %v1140 = vpop.f32.mrf.mxu0
        %1141 = vmatprep.mubr.bf16.mxu0 0
        %1142 = vmatmul.mubr.bf16.gmra.mxu0 %v979
        %v1143 = vpop.f32.mrf.mxu0
        %v1144 = vadd.f32 %v931, %v1143
        %v1145 = vpop.f32.mrf.mxu0
        %v1146 = vpop.f32.mrf.mxu0
        %v1147 = vadd.f32 %v931, %v1146
        %v1148 = vpop.f32.mrf.mxu0
        %1149 = vmatprep.mubr.bf16.mxu0 0
        %1150 = vmatmul.mubr.bf16.gmra.mxu0 %v982
        %v1151 = vpop.f32.mrf.mxu0
        %v1152 = vadd.f32 %v931, %v1151
        %v1153 = vpop.f32.mrf.mxu0
        %v1154 = vpop.f32.mrf.mxu0
        %v1155 = vadd.f32 %v931, %v1154
        %v1156 = vpop.f32.mrf.mxu0
        %1157 = vmatprep.mubr.bf16.mxu0 0
        %1158 = vmatmul.mubr.bf16.gmra.mxu0 %v985
        %v1159 = vpop.f32.mrf.mxu0
        %v1160 = vadd.f32 %v931, %v1159
        %v1161 = vpop.f32.mrf.mxu0
        %v1162 = vpop.f32.mrf.mxu0
        %v1163 = vadd.f32 %v931, %v1162
        %v1164 = vpop.f32.mrf.mxu0
        %1165 = vmatprep.mubr.bf16.mxu0 0
        %1166 = vmatmul.mubr.bf16.gmra.mxu0 %v988
        %v1167 = vpop.f32.mrf.mxu0
        %v1168 = vadd.f32 %v931, %v1167
        %v1169 = vpop.f32.mrf.mxu0
        %v1170 = vpop.f32.mrf.mxu0
        %v1171 = vadd.f32 %v931, %v1170
        %v1172 = vpop.f32.mrf.mxu0
        %1173 = vmatprep.mubr.bf16.mxu0 0
        %1174 = vmatmul.mubr.bf16.gmra.mxu0 %v991
        %v1175 = vpop.f32.mrf.mxu0
        %v1176 = vadd.f32 %v931, %v1175
        %v1177 = vpop.f32.mrf.mxu0
        %v1178 = vpop.f32.mrf.mxu0
        %v1179 = vadd.f32 %v931, %v1178
        %v1180 = vpop.f32.mrf.mxu0
        %1181 = vmatprep.mubr.bf16.mxu0 0
        %1182 = vmatmul.mubr.bf16.gmra.mxu0 %v994
        %v1183 = vpop.f32.mrf.mxu0
        %v1184 = vadd.f32 %v931, %v1183
        %v1185 = vpop.f32.mrf.mxu0
        %v1186 = vpop.f32.mrf.mxu0
        %v1187 = vadd.f32 %v931, %v1186
        %v1188 = vpop.f32.mrf.mxu0
        %1189 = vmatprep.mubr.bf16.mxu0 0
        %1190 = vmatmul.mubr.bf16.gmra.mxu0 %v997
        %v1191 = vpop.f32.mrf.mxu0
        %v1192 = vadd.f32 %v931, %v1191
        %v1193 = vpop.f32.mrf.mxu0
        %v1194 = vpop.f32.mrf.mxu0
        %v1195 = vadd.f32 %v931, %v1194
        %v1196 = vpop.f32.mrf.mxu0
        %1197 = vmatprep.mubr.bf16.mxu0 0
        %1198 = vmatmul.mubr.bf16.gmra.mxu0 %v1000
        %v1199 = vpop.f32.mrf.mxu0
        %v1200 = vadd.f32 %v931, %v1199
        %v1201 = vpop.f32.mrf.mxu0
        %v1202 = vpop.f32.mrf.mxu0
        %v1203 = vadd.f32 %v931, %v1202
        %v1204 = vpop.f32.mrf.mxu0
        %1205 = vmatprep.mubr.bf16.mxu0 0
        %1206 = vmatmul.mubr.bf16.gmra.mxu0 %v1003
        %v1207 = vpop.f32.mrf.mxu0
        %v1208 = vadd.f32 %v931, %v1207
        %v1209 = vpop.f32.mrf.mxu0
        %v1210 = vpop.f32.mrf.mxu0
        %v1211 = vadd.f32 %v931, %v1210
        %v1212 = vpop.f32.mrf.mxu0
        %1213 = vmatprep.mubr.bf16.mxu0 0
        %1214 = vmatmul.mubr.bf16.gmra.mxu0 %v1006
        %v1215 = vpop.f32.mrf.mxu0
        %v1216 = vadd.f32 %v931, %v1215
        %v1217 = vpop.f32.mrf.mxu0
        %v1218 = vpop.f32.mrf.mxu0
        %v1219 = vadd.f32 %v931, %v1218
        %v1220 = vpop.f32.mrf.mxu0
        %1221 = vmatprep.mubr.bf16.mxu0 0
        %1222 = vmatmul.mubr.bf16.gmra.mxu0 %v1009
        %v1223 = vpop.f32.mrf.mxu0
        %v1224 = vadd.f32 %v931, %v1223
        %v1225 = vpop.f32.mrf.mxu0
        %v1226 = vpop.f32.mrf.mxu0
        %v1227 = vadd.f32 %v931, %v1226
        %v1228 = vpop.f32.mrf.mxu0
        %1229 = vmatprep.mubr.bf16.mxu0 0
        %1230 = vmatmul.mubr.bf16.gmra.mxu0 %v1012
        %v1231 = vpop.f32.mrf.mxu0
        %v1232 = vadd.f32 %v931, %v1231
        %v1233 = vpop.f32.mrf.mxu0
        %v1234 = vpop.f32.mrf.mxu0
        %v1235 = vadd.f32 %v931, %v1234
        %v1236 = vpop.f32.mrf.mxu0
        %1237 = vmatprep.mubr.bf16.mxu0 0
        %1238 = vmatmul.mubr.bf16.gmra.mxu0 %v1015
        %v1239 = vpop.f32.mrf.mxu0
        %v1240 = vadd.f32 %v931, %v1239
        %v1241 = vpop.f32.mrf.mxu0
        %v1242 = vpop.f32.mrf.mxu0
        %v1243 = vadd.f32 %v931, %v1242
        %v1244 = vpop.f32.mrf.mxu0
        %1245 = vmatprep.mubr.bf16.mxu0 0
        %1246 = vmatmul.mubr.bf16.gmra.mxu0 %v1018
        %v1247 = vpop.f32.mrf.mxu0
        %v1248 = vadd.f32 %v931, %v1247
        %v1249 = vpop.f32.mrf.mxu0
        %v1250 = vpop.f32.mrf.mxu0
        %v1251 = vadd.f32 %v931, %v1250
        %v1252 = vpop.f32.mrf.mxu0
        %1253 = vmatprep.mubr.bf16.mxu0 0
        %1254 = vmatmul.mubr.bf16.gmra.mxu0 %v1021
        %v1255 = vpop.f32.mrf.mxu0
        %v1256 = vadd.f32 %v931, %v1255
        %v1257 = vpop.f32.mrf.mxu0
        %v1258 = vpop.f32.mrf.mxu0
        %v1259 = vadd.f32 %v931, %v1258
        %v1260 = vpop.f32.mrf.mxu0
        %1261 = vmatprep.mubr.bf16.mxu0 0
        %1262 = vmatmul.mubr.bf16.gmra.mxu0 %v1024
        %v1263 = vpop.f32.mrf.mxu0
        %v1264 = vadd.f32 %v931, %v1263
        %v1265 = vpop.f32.mrf.mxu0
        %v1266 = vpop.f32.mrf.mxu0
        %v1267 = vadd.f32 %v931, %v1266
        %v1268 = vpop.f32.mrf.mxu0
        %1269 = vmatprep.mubr.bf16.mxu0 0
        %1270 = vmatmul.mubr.bf16.gmra.mxu0 %v1027
        %v1271 = vpop.f32.mrf.mxu0
        %v1272 = vadd.f32 %v931, %v1271
        %v1273 = vpop.f32.mrf.mxu0
        %v1274 = vpop.f32.mrf.mxu0
        %v1275 = vadd.f32 %v931, %v1274
        %v1276 = vpop.f32.mrf.mxu0
        %1277 = vmatprep.mubr.bf16.mxu0 0
        %1278 = vmatmul.mubr.bf16.gmra.mxu0 %v1030
        %v1279 = vpop.f32.mrf.mxu0
        %v1280 = vadd.f32 %v931, %v1279
        %v1281 = vpop.f32.mrf.mxu0
        %v1282 = vpop.f32.mrf.mxu0
        %v1283 = vadd.f32 %v931, %v1282
        %v1284 = vpop.f32.mrf.mxu0
        %1285 = vmatprep.mubr.bf16.mxu0 0
        %1286 = vmatmul.mubr.bf16.gmra.mxu0 %v1033
        %v1287 = vpop.f32.mrf.mxu0
        %v1288 = vadd.f32 %v931, %v1287
        %v1289 = vpop.f32.mrf.mxu0
        %v1290 = vpop.f32.mrf.mxu0
        %v1291 = vadd.f32 %v931, %v1290
        %v1292 = vpop.f32.mrf.mxu0
        %1293 = vmatprep.mubr.bf16.mxu0 0
        %1294 = vmatmul.mubr.bf16.gmra.mxu0 %v1036
        %v1295 = vpop.f32.mrf.mxu0
        %v1296 = vadd.f32 %v931, %v1295
        %v1297 = vpop.f32.mrf.mxu0
        %v1298 = vpop.f32.mrf.mxu0
        %v1299 = vadd.f32 %v931, %v1298
        %v1300 = vpop.f32.mrf.mxu0
        %1301 = vmatprep.mubr.bf16.mxu0 0
        %1302 = vmatmul.mubr.bf16.gmra.mxu0 %v1039
        %v1303 = vpop.f32.mrf.mxu0
        %v1304 = vadd.f32 %v931, %v1303
        %v1305 = vpop.f32.mrf.mxu0
        %v1306 = vpop.f32.mrf.mxu0
        %v1307 = vadd.f32 %v931, %v1306
        %v1308 = vpop.f32.mrf.mxu0
        %1309 = vmatprep.mubr.bf16.mxu0 0
        %1310 = vmatmul.mubr.bf16.gmra.mxu0 %v1042
        %v1311 = vpop.f32.mrf.mxu0
        %v1312 = vadd.f32 %v931, %v1311
        %v1313 = vpop.f32.mrf.mxu0
        %v1314 = vpop.f32.mrf.mxu0
        %v1315 = vadd.f32 %v931, %v1314
        %v1316 = vpop.f32.mrf.mxu0
        %1317 = vmatprep.mubr.bf16.mxu0 0
        %1318 = vmatmul.mubr.bf16.gmra.mxu0 %v1045
        %v1319 = vpop.f32.mrf.mxu0
        %v1320 = vadd.f32 %v931, %v1319
        %v1321 = vpop.f32.mrf.mxu0
        %v1322 = vpop.f32.mrf.mxu0
        %v1323 = vadd.f32 %v931, %v1322
        %v1324 = vpop.f32.mrf.mxu0
        %1325 = vmatprep.mubr.bf16.mxu0 0
        %1326 = vmatmul.mubr.bf16.gmra.mxu0 %v1048
        %v1327 = vpop.f32.mrf.mxu0
        %v1328 = vadd.f32 %v931, %v1327
        %v1329 = vpop.f32.mrf.mxu0
        %v1330 = vpop.f32.mrf.mxu0
        %v1331 = vadd.f32 %v931, %v1330
        %v1332 = vpop.f32.mrf.mxu0
        %1333 = vmatprep.mubr.bf16.mxu0 0
        %1334 = vmatmul.mubr.bf16.gmra.mxu0 %v1051
        %v1335 = vpop.f32.mrf.mxu0
        %v1336 = vadd.f32 %v931, %v1335
        %v1337 = vpop.f32.mrf.mxu0
        %v1338 = vpop.f32.mrf.mxu0
        %v1339 = vadd.f32 %v931, %v1338
        %v1340 = vpop.f32.mrf.mxu0
        %1341 = vdwg.mxu0
        %v1342 = vmax.f32 %v1088, 0.0
        %v1343 = vmax.f32 %v1091, 0.0
        %v1344 = vmax.f32 %v1096, 0.0
        %v1345 = vmax.f32 %v1099, 0.0
        %v1346 = vmax.f32 %v1104, 0.0
        %v1347 = vmax.f32 %v1107, 0.0
        %v1348 = vmax.f32 %v1112, 0.0
        %v1349 = vmax.f32 %v1115, 0.0
        %v1350 = vmax.f32 %v1120, 0.0
        %v1351 = vmax.f32 %v1123, 0.0
        %v1352 = vmax.f32 %v1128, 0.0
        %v1353 = vmax.f32 %v1131, 0.0
        %v1354 = vmax.f32 %v1136, 0.0
        %v1355 = vmax.f32 %v1139, 0.0
        %v1356 = vmax.f32 %v1144, 0.0
        %v1357 = vmax.f32 %v1147, 0.0
        %v1358 = vmax.f32 %v1152, 0.0
        %v1359 = vmax.f32 %v1155, 0.0
        %v1360 = vmax.f32 %v1160, 0.0
        %v1361 = vmax.f32 %v1163, 0.0
        %v1362 = vmax.f32 %v1168, 0.0
        %v1363 = vmax.f32 %v1171, 0.0
        %v1364 = vmax.f32 %v1176, 0.0
        %v1365 = vmax.f32 %v1179, 0.0
        %v1366 = vmax.f32 %v1184, 0.0
        %v1367 = vmax.f32 %v1187, 0.0
        %v1368 = vmax.f32 %v1192, 0.0
        %v1369 = vmax.f32 %v1195, 0.0
        %v1370 = vmax.f32 %v1200, 0.0
        %v1371 = vmax.f32 %v1203, 0.0
        %v1372 = vmax.f32 %v1208, 0.0
        %v1373 = vmax.f32 %v1211, 0.0
        %v1374 = vmax.f32 %v1216, 0.0
        %v1375 = vmax.f32 %v1219, 0.0
        %v1376 = vmax.f32 %v1224, 0.0
        %v1377 = vmax.f32 %v1227, 0.0
        %v1378 = vmax.f32 %v1232, 0.0
        %v1379 = vmax.f32 %v1235, 0.0
        %v1380 = vmax.f32 %v1240, 0.0
        %v1381 = vmax.f32 %v1243, 0.0
        %v1382 = vmax.f32 %v1248, 0.0
        %v1383 = vmax.f32 %v1251, 0.0
        %v1384 = vmax.f32 %v1256, 0.0
        %v1385 = vmax.f32 %v1259, 0.0
        %v1386 = vmax.f32 %v1264, 0.0
        %v1387 = vmax.f32 %v1267, 0.0
        %v1388 = vmax.f32 %v1272, 0.0
        %v1389 = vmax.f32 %v1275, 0.0
        %v1390 = vmax.f32 %v1280, 0.0
        %v1391 = vmax.f32 %v1283, 0.0
        %v1392 = vmax.f32 %v1288, 0.0
        %v1393 = vmax.f32 %v1291, 0.0
        %v1394 = vmax.f32 %v1296, 0.0
        %v1395 = vmax.f32 %v1299, 0.0
        %v1396 = vmax.f32 %v1304, 0.0
        %v1397 = vmax.f32 %v1307, 0.0
        %v1398 = vmax.f32 %v1312, 0.0
        %v1399 = vmax.f32 %v1315, 0.0
        %v1400 = vmax.f32 %v1320, 0.0
        %v1401 = vmax.f32 %v1323, 0.0
        %v1402 = vmax.f32 %v1328, 0.0
        %v1403 = vmax.f32 %v1331, 0.0
        %v1404 = vmax.f32 %v1336, 0.0
        %v1405 = vmax.f32 %v1339, 0.0
        %v1406 = vpack.c.bf16 %v1343, %v1342
        %v1407 = vpack.c.bf16 %v1345, %v1344
        %v1408 = vpack.c.bf16 %v1347, %v1346
        %v1409 = vpack.c.bf16 %v1349, %v1348
        %v1410 = vpack.c.bf16 %v1351, %v1350
        %v1411 = vpack.c.bf16 %v1353, %v1352
        %v1412 = vpack.c.bf16 %v1355, %v1354
        %v1413 = vpack.c.bf16 %v1357, %v1356
        %v1414 = vpack.c.bf16 %v1359, %v1358
        %v1415 = vpack.c.bf16 %v1361, %v1360
        %v1416 = vpack.c.bf16 %v1363, %v1362
        %v1417 = vpack.c.bf16 %v1365, %v1364
        %v1418 = vpack.c.bf16 %v1367, %v1366
        %v1419 = vpack.c.bf16 %v1369, %v1368
        %v1420 = vpack.c.bf16 %v1371, %v1370
        %v1421 = vpack.c.bf16 %v1373, %v1372
        %v1422 = vpack.c.bf16 %v1375, %v1374
        %v1423 = vpack.c.bf16 %v1377, %v1376
        %v1424 = vpack.c.bf16 %v1379, %v1378
        %v1425 = vpack.c.bf16 %v1381, %v1380
        %v1426 = vpack.c.bf16 %v1383, %v1382
        %v1427 = vpack.c.bf16 %v1385, %v1384
        %v1428 = vpack.c.bf16 %v1387, %v1386
        %v1429 = vpack.c.bf16 %v1389, %v1388
        %v1430 = vpack.c.bf16 %v1391, %v1390
        %v1431 = vpack.c.bf16 %v1393, %v1392
        %v1432 = vpack.c.bf16 %v1395, %v1394
        %v1433 = vpack.c.bf16 %v1397, %v1396
        %v1434 = vpack.c.bf16 %v1399, %v1398
        %v1435 = vpack.c.bf16 %v1401, %v1400
        %v1436 = vpack.c.bf16 %v1403, %v1402
        %v1437 = vpack.c.bf16 %v1405, %v1404
        %v1438 = vld [vmem:[%s5] sm:$0xf]
        %v1439 = vld [vmem:[%s5 + $0x4] sm:$0xf]
        %v1440 = vld [vmem:[%s5 + $0x8] sm:$0xf]
        %v1441 = vld [vmem:[%s5 + $0xc] sm:$0xf]
        %v1442 = vld [vmem:[%s5 + $0x10] sm:$0xf]
        %v1443 = vld [vmem:[%s5 + $0x14] sm:$0xf]
        %v1444 = vld [vmem:[%s5 + $0x18] sm:$0xf]
        %v1445 = vld [vmem:[%s5 + $0x1c] sm:$0xf]
        %v1446 = vld [vmem:[%s6] sm:$0x1]
        %v1448 = vlaneseq
        %v1449 = vshrl.u32 %v1448, 7
        %v1450 = vsub.s32 0, %v1449
        %v1451 = vrot.slane %v1446, %v1450
        %v1461 = vunpack.c.l.b16 %v1438
        %v1462 = vunpack.c.l.b16 %v1439
        %v1463 = vunpack.c.l.b16 %v1440
        %v1464 = vunpack.c.l.b16 %v1441
        %v1465 = vunpack.c.l.b16 %v1442
        %v1466 = vunpack.c.l.b16 %v1443
        %v1467 = vunpack.c.l.b16 %v1444
        %v1468 = vunpack.c.l.b16 %v1445
        %v1469 = vpack.c.b16 %v1462, %v1461
        %v1470 = vpack.c.b16 %v1464, %v1463
        %v1471 = vpack.c.b16 %v1466, %v1465
        %v1472 = vpack.c.b16 %v1468, %v1467
        %v1478 = vsel %vm436, %v1406, 0
        %v1481 = vsel %vm436, %v1407, 0
        %v1484 = vsel %vm436, %v1408, 0
        %v1487 = vsel %vm436, %v1409, 0
        %v1490 = vsel %vm436, %v1410, 0
        %v1493 = vsel %vm436, %v1411, 0
        %v1496 = vsel %vm436, %v1412, 0
        %v1499 = vsel %vm436, %v1413, 0
        %v1502 = vsel %vm436, %v1414, 0
        %v1505 = vsel %vm436, %v1415, 0
        %v1508 = vsel %vm436, %v1416, 0
        %v1511 = vsel %vm436, %v1417, 0
        %v1514 = vsel %vm436, %v1418, 0
        %v1517 = vsel %vm436, %v1419, 0
        %v1520 = vsel %vm436, %v1420, 0
        %v1523 = vsel %vm436, %v1421, 0
        %v1526 = vsel %vm436, %v1422, 0
        %v1529 = vsel %vm436, %v1423, 0
        %v1532 = vsel %vm436, %v1424, 0
        %v1535 = vsel %vm436, %v1425, 0
        %v1538 = vsel %vm436, %v1426, 0
        %v1541 = vsel %vm436, %v1427, 0
        %v1544 = vsel %vm436, %v1428, 0
        %v1547 = vsel %vm436, %v1429, 0
        %v1550 = vsel %vm436, %v1430, 0
        %v1553 = vsel %vm436, %v1431, 0
        %v1556 = vsel %vm436, %v1432, 0
        %v1559 = vsel %vm436, %v1433, 0
        %v1562 = vsel %vm436, %v1434, 0
        %v1565 = vsel %vm436, %v1435, 0
        %v1568 = vsel %vm436, %v1436, 0
        %v1571 = vsel %vm436, %v1437, 0
        %1573 = vmatprep.subr.bf16.mxu0 0
        %1574 = vmatpush1.bf16.msra.mxu0 0
        %1575 = vmatprep.subr.bf16.mxu0 0
        %1576 = vmatpush1.bf16.msra.mxu0 0
        %1577 = vmatprep.subr.bf16.mxu0 0
        %1578 = vmatpush1.bf16.msra.mxu0 0
        %1579 = vmatprep.subr.bf16.mxu0 0
        %1580 = vmatpush1.bf16.msra.mxu0 0
        %1581 = vmatprep.subr.bf16.mxu0 0
        %1582 = vmatpush1.bf16.msra.mxu0 %v1472
        %1583 = vmatprep.subr.bf16.mxu0 0
        %1584 = vmatpush1.bf16.msra.mxu0 %v1471
        %1585 = vmatprep.subr.bf16.mxu0 0
        %1586 = vmatpush1.bf16.msra.mxu0 %v1470
        %1587 = vmatprep.subr.bf16.mxu0 0
        %1588 = vmatpush1.bf16.msra.mxu0 %v1469
        %1589 = vmatprep.subr.bf16.mxu0 0
        %1590 = vmatpush2.bf16.msra.mxu0 0
        %1591 = vmatprep.subr.bf16.mxu0 0
        %1592 = vmatpush2.bf16.msra.mxu0 0
        %1593 = vmatprep.subr.bf16.mxu0 0
        %1594 = vmatpush2.bf16.msra.mxu0 0
        %1595 = vmatprep.subr.bf16.mxu0 0
        %1596 = vmatpush2.bf16.msra.mxu0 0
        %1597 = vmatprep.subr.bf16.mxu0 0
        %1598 = vmatpush2.bf16.msra.mxu0 0
        %1599 = vmatprep.subr.bf16.mxu0 0
        %1600 = vmatpush2.bf16.msra.mxu0 0
        %1601 = vmatprep.subr.bf16.mxu0 0
        %1602 = vmatpush2.bf16.msra.mxu0 0
        %1603 = vmatprep.subr.bf16.mxu0 0
        %1604 = vmatpush2.bf16.msra.mxu0 0
        %1605 = vmatprep.mubr.bf16.mxu0 0
        %1606 = vmatmul.mubr.bf16.gmra.mxu0 %v1478
        %v1607 = vpop.f32.mrf.mxu0
        %v1608 = vadd.f32 %v1451, %v1607
        %v1609 = vpop.f32.mrf.mxu0
        %v1610 = vpop.f32.mrf.mxu0
        %v1611 = vadd.f32 %v1451, %v1610
        %v1612 = vpop.f32.mrf.mxu0
        %1613 = vmatprep.mubr.bf16.mxu0 0
        %1614 = vmatmul.mubr.bf16.gmra.mxu0 %v1481
        %v1615 = vpop.f32.mrf.mxu0
        %v1616 = vadd.f32 %v1451, %v1615
        %v1617 = vpop.f32.mrf.mxu0
        %v1618 = vpop.f32.mrf.mxu0
        %v1619 = vadd.f32 %v1451, %v1618
        %v1620 = vpop.f32.mrf.mxu0
        %1621 = vmatprep.mubr.bf16.mxu0 0
        %1622 = vmatmul.mubr.bf16.gmra.mxu0 %v1484
        %v1623 = vpop.f32.mrf.mxu0
        %v1624 = vadd.f32 %v1451, %v1623
        %v1625 = vpop.f32.mrf.mxu0
        %v1626 = vpop.f32.mrf.mxu0
        %v1627 = vadd.f32 %v1451, %v1626
        %v1628 = vpop.f32.mrf.mxu0
        %1629 = vmatprep.mubr.bf16.mxu0 0
        %1630 = vmatmul.mubr.bf16.gmra.mxu0 %v1487
        %v1631 = vpop.f32.mrf.mxu0
        %v1632 = vadd.f32 %v1451, %v1631
        %v1633 = vpop.f32.mrf.mxu0
        %v1634 = vpop.f32.mrf.mxu0
        %v1635 = vadd.f32 %v1451, %v1634
        %v1636 = vpop.f32.mrf.mxu0
        %1637 = vmatprep.mubr.bf16.mxu0 0
        %1638 = vmatmul.mubr.bf16.gmra.mxu0 %v1490
        %v1639 = vpop.f32.mrf.mxu0
        %v1640 = vadd.f32 %v1451, %v1639
        %v1641 = vpop.f32.mrf.mxu0
        %v1642 = vpop.f32.mrf.mxu0
        %v1643 = vadd.f32 %v1451, %v1642
        %v1644 = vpop.f32.mrf.mxu0
        %1645 = vmatprep.mubr.bf16.mxu0 0
        %1646 = vmatmul.mubr.bf16.gmra.mxu0 %v1493
        %v1647 = vpop.f32.mrf.mxu0
        %v1648 = vadd.f32 %v1451, %v1647
        %v1649 = vpop.f32.mrf.mxu0
        %v1650 = vpop.f32.mrf.mxu0
        %v1651 = vadd.f32 %v1451, %v1650
        %v1652 = vpop.f32.mrf.mxu0
        %1653 = vmatprep.mubr.bf16.mxu0 0
        %1654 = vmatmul.mubr.bf16.gmra.mxu0 %v1496
        %v1655 = vpop.f32.mrf.mxu0
        %v1656 = vadd.f32 %v1451, %v1655
        %v1657 = vpop.f32.mrf.mxu0
        %v1658 = vpop.f32.mrf.mxu0
        %v1659 = vadd.f32 %v1451, %v1658
        %v1660 = vpop.f32.mrf.mxu0
        %1661 = vmatprep.mubr.bf16.mxu0 0
        %1662 = vmatmul.mubr.bf16.gmra.mxu0 %v1499
        %v1663 = vpop.f32.mrf.mxu0
        %v1664 = vadd.f32 %v1451, %v1663
        %v1665 = vpop.f32.mrf.mxu0
        %v1666 = vpop.f32.mrf.mxu0
        %v1667 = vadd.f32 %v1451, %v1666
        %v1668 = vpop.f32.mrf.mxu0
        %1669 = vmatprep.mubr.bf16.mxu0 0
        %1670 = vmatmul.mubr.bf16.gmra.mxu0 %v1502
        %v1671 = vpop.f32.mrf.mxu0
        %v1672 = vadd.f32 %v1451, %v1671
        %v1673 = vpop.f32.mrf.mxu0
        %v1674 = vpop.f32.mrf.mxu0
        %v1675 = vadd.f32 %v1451, %v1674
        %v1676 = vpop.f32.mrf.mxu0
        %1677 = vmatprep.mubr.bf16.mxu0 0
        %1678 = vmatmul.mubr.bf16.gmra.mxu0 %v1505
        %v1679 = vpop.f32.mrf.mxu0
        %v1680 = vadd.f32 %v1451, %v1679
        %v1681 = vpop.f32.mrf.mxu0
        %v1682 = vpop.f32.mrf.mxu0
        %v1683 = vadd.f32 %v1451, %v1682
        %v1684 = vpop.f32.mrf.mxu0
        %1685 = vmatprep.mubr.bf16.mxu0 0
        %1686 = vmatmul.mubr.bf16.gmra.mxu0 %v1508
        %v1687 = vpop.f32.mrf.mxu0
        %v1688 = vadd.f32 %v1451, %v1687
        %v1689 = vpop.f32.mrf.mxu0
        %v1690 = vpop.f32.mrf.mxu0
        %v1691 = vadd.f32 %v1451, %v1690
        %v1692 = vpop.f32.mrf.mxu0
        %1693 = vmatprep.mubr.bf16.mxu0 0
        %1694 = vmatmul.mubr.bf16.gmra.mxu0 %v1511
        %v1695 = vpop.f32.mrf.mxu0
        %v1696 = vadd.f32 %v1451, %v1695
        %v1697 = vpop.f32.mrf.mxu0
        %v1698 = vpop.f32.mrf.mxu0
        %v1699 = vadd.f32 %v1451, %v1698
        %v1700 = vpop.f32.mrf.mxu0
        %1701 = vmatprep.mubr.bf16.mxu0 0
        %1702 = vmatmul.mubr.bf16.gmra.mxu0 %v1514
        %v1703 = vpop.f32.mrf.mxu0
        %v1704 = vadd.f32 %v1451, %v1703
        %v1705 = vpop.f32.mrf.mxu0
        %v1706 = vpop.f32.mrf.mxu0
        %v1707 = vadd.f32 %v1451, %v1706
        %v1708 = vpop.f32.mrf.mxu0
        %1709 = vmatprep.mubr.bf16.mxu0 0
        %1710 = vmatmul.mubr.bf16.gmra.mxu0 %v1517
        %v1711 = vpop.f32.mrf.mxu0
        %v1712 = vadd.f32 %v1451, %v1711
        %v1713 = vpop.f32.mrf.mxu0
        %v1714 = vpop.f32.mrf.mxu0
        %v1715 = vadd.f32 %v1451, %v1714
        %v1716 = vpop.f32.mrf.mxu0
        %1717 = vmatprep.mubr.bf16.mxu0 0
        %1718 = vmatmul.mubr.bf16.gmra.mxu0 %v1520
        %v1719 = vpop.f32.mrf.mxu0
        %v1720 = vadd.f32 %v1451, %v1719
        %v1721 = vpop.f32.mrf.mxu0
        %v1722 = vpop.f32.mrf.mxu0
        %v1723 = vadd.f32 %v1451, %v1722
        %v1724 = vpop.f32.mrf.mxu0
        %1725 = vmatprep.mubr.bf16.mxu0 0
        %1726 = vmatmul.mubr.bf16.gmra.mxu0 %v1523
        %v1727 = vpop.f32.mrf.mxu0
        %v1728 = vadd.f32 %v1451, %v1727
        %v1729 = vpop.f32.mrf.mxu0
        %v1730 = vpop.f32.mrf.mxu0
        %v1731 = vadd.f32 %v1451, %v1730
        %v1732 = vpop.f32.mrf.mxu0
        %1733 = vmatprep.mubr.bf16.mxu0 0
        %1734 = vmatmul.mubr.bf16.gmra.mxu0 %v1526
        %v1735 = vpop.f32.mrf.mxu0
        %v1736 = vadd.f32 %v1451, %v1735
        %v1737 = vpop.f32.mrf.mxu0
        %v1738 = vpop.f32.mrf.mxu0
        %v1739 = vadd.f32 %v1451, %v1738
        %v1740 = vpop.f32.mrf.mxu0
        %1741 = vmatprep.mubr.bf16.mxu0 0
        %1742 = vmatmul.mubr.bf16.gmra.mxu0 %v1529
        %v1743 = vpop.f32.mrf.mxu0
        %v1744 = vadd.f32 %v1451, %v1743
        %v1745 = vpop.f32.mrf.mxu0
        %v1746 = vpop.f32.mrf.mxu0
        %v1747 = vadd.f32 %v1451, %v1746
        %v1748 = vpop.f32.mrf.mxu0
        %1749 = vmatprep.mubr.bf16.mxu0 0
        %1750 = vmatmul.mubr.bf16.gmra.mxu0 %v1532
        %v1751 = vpop.f32.mrf.mxu0
        %v1752 = vadd.f32 %v1451, %v1751
        %v1753 = vpop.f32.mrf.mxu0
        %v1754 = vpop.f32.mrf.mxu0
        %v1755 = vadd.f32 %v1451, %v1754
        %v1756 = vpop.f32.mrf.mxu0
        %1757 = vmatprep.mubr.bf16.mxu0 0
        %1758 = vmatmul.mubr.bf16.gmra.mxu0 %v1535
        %v1759 = vpop.f32.mrf.mxu0
        %v1760 = vadd.f32 %v1451, %v1759
        %v1761 = vpop.f32.mrf.mxu0
        %v1762 = vpop.f32.mrf.mxu0
        %v1763 = vadd.f32 %v1451, %v1762
        %v1764 = vpop.f32.mrf.mxu0
        %1765 = vmatprep.mubr.bf16.mxu0 0
        %1766 = vmatmul.mubr.bf16.gmra.mxu0 %v1538
        %v1767 = vpop.f32.mrf.mxu0
        %v1768 = vadd.f32 %v1451, %v1767
        %v1769 = vpop.f32.mrf.mxu0
        %v1770 = vpop.f32.mrf.mxu0
        %v1771 = vadd.f32 %v1451, %v1770
        %v1772 = vpop.f32.mrf.mxu0
        %1773 = vmatprep.mubr.bf16.mxu0 0
        %1774 = vmatmul.mubr.bf16.gmra.mxu0 %v1541
        %v1775 = vpop.f32.mrf.mxu0
        %v1776 = vadd.f32 %v1451, %v1775
        %v1777 = vpop.f32.mrf.mxu0
        %v1778 = vpop.f32.mrf.mxu0
        %v1779 = vadd.f32 %v1451, %v1778
        %v1780 = vpop.f32.mrf.mxu0
        %1781 = vmatprep.mubr.bf16.mxu0 0
        %1782 = vmatmul.mubr.bf16.gmra.mxu0 %v1544
        %v1783 = vpop.f32.mrf.mxu0
        %v1784 = vadd.f32 %v1451, %v1783
        %v1785 = vpop.f32.mrf.mxu0
        %v1786 = vpop.f32.mrf.mxu0
        %v1787 = vadd.f32 %v1451, %v1786
        %v1788 = vpop.f32.mrf.mxu0
        %1789 = vmatprep.mubr.bf16.mxu0 0
        %1790 = vmatmul.mubr.bf16.gmra.mxu0 %v1547
        %v1791 = vpop.f32.mrf.mxu0
        %v1792 = vadd.f32 %v1451, %v1791
        %v1793 = vpop.f32.mrf.mxu0
        %v1794 = vpop.f32.mrf.mxu0
        %v1795 = vadd.f32 %v1451, %v1794
        %v1796 = vpop.f32.mrf.mxu0
        %1797 = vmatprep.mubr.bf16.mxu0 0
        %1798 = vmatmul.mubr.bf16.gmra.mxu0 %v1550
        %v1799 = vpop.f32.mrf.mxu0
        %v1800 = vadd.f32 %v1451, %v1799
        %v1801 = vpop.f32.mrf.mxu0
        %v1802 = vpop.f32.mrf.mxu0
        %v1803 = vadd.f32 %v1451, %v1802
        %v1804 = vpop.f32.mrf.mxu0
        %1805 = vmatprep.mubr.bf16.mxu0 0
        %1806 = vmatmul.mubr.bf16.gmra.mxu0 %v1553
        %v1807 = vpop.f32.mrf.mxu0
        %v1808 = vadd.f32 %v1451, %v1807
        %v1809 = vpop.f32.mrf.mxu0
        %v1810 = vpop.f32.mrf.mxu0
        %v1811 = vadd.f32 %v1451, %v1810
        %v1812 = vpop.f32.mrf.mxu0
        %1813 = vmatprep.mubr.bf16.mxu0 0
        %1814 = vmatmul.mubr.bf16.gmra.mxu0 %v1556
        %v1815 = vpop.f32.mrf.mxu0
        %v1816 = vadd.f32 %v1451, %v1815
        %v1817 = vpop.f32.mrf.mxu0
        %v1818 = vpop.f32.mrf.mxu0
        %v1819 = vadd.f32 %v1451, %v1818
        %v1820 = vpop.f32.mrf.mxu0
        %1821 = vmatprep.mubr.bf16.mxu0 0
        %1822 = vmatmul.mubr.bf16.gmra.mxu0 %v1559
        %v1823 = vpop.f32.mrf.mxu0
        %v1824 = vadd.f32 %v1451, %v1823
        %v1825 = vpop.f32.mrf.mxu0
        %v1826 = vpop.f32.mrf.mxu0
        %v1827 = vadd.f32 %v1451, %v1826
        %v1828 = vpop.f32.mrf.mxu0
        %1829 = vmatprep.mubr.bf16.mxu0 0
        %1830 = vmatmul.mubr.bf16.gmra.mxu0 %v1562
        %v1831 = vpop.f32.mrf.mxu0
        %v1832 = vadd.f32 %v1451, %v1831
        %v1833 = vpop.f32.mrf.mxu0
        %v1834 = vpop.f32.mrf.mxu0
        %v1835 = vadd.f32 %v1451, %v1834
        %v1836 = vpop.f32.mrf.mxu0
        %1837 = vmatprep.mubr.bf16.mxu0 0
        %1838 = vmatmul.mubr.bf16.gmra.mxu0 %v1565
        %v1839 = vpop.f32.mrf.mxu0
        %v1840 = vadd.f32 %v1451, %v1839
        %v1841 = vpop.f32.mrf.mxu0
        %v1842 = vpop.f32.mrf.mxu0
        %v1843 = vadd.f32 %v1451, %v1842
        %v1844 = vpop.f32.mrf.mxu0
        %1845 = vmatprep.mubr.bf16.mxu0 0
        %1846 = vmatmul.mubr.bf16.gmra.mxu0 %v1568
        %v1847 = vpop.f32.mrf.mxu0
        %v1848 = vadd.f32 %v1451, %v1847
        %v1849 = vpop.f32.mrf.mxu0
        %v1850 = vpop.f32.mrf.mxu0
        %v1851 = vadd.f32 %v1451, %v1850
        %v1852 = vpop.f32.mrf.mxu0
        %1853 = vmatprep.mubr.bf16.mxu0 0
        %1854 = vmatmul.mubr.bf16.gmra.mxu0 %v1571
        %v1855 = vpop.f32.mrf.mxu0
        %v1856 = vadd.f32 %v1451, %v1855
        %v1857 = vpop.f32.mrf.mxu0
        %v1858 = vpop.f32.mrf.mxu0
        %v1859 = vadd.f32 %v1451, %v1858
        %v1860 = vpop.f32.mrf.mxu0
        %1861 = vdwg.mxu0
        %v1862 = vmax.f32 %v1608, 0.0
        %v1863 = vmax.f32 %v1611, 0.0
        %v1864 = vmax.f32 %v1616, 0.0
        %v1865 = vmax.f32 %v1619, 0.0
        %v1866 = vmax.f32 %v1624, 0.0
        %v1867 = vmax.f32 %v1627, 0.0
        %v1868 = vmax.f32 %v1632, 0.0
        %v1869 = vmax.f32 %v1635, 0.0
        %v1870 = vmax.f32 %v1640, 0.0
        %v1871 = vmax.f32 %v1643, 0.0
        %v1872 = vmax.f32 %v1648, 0.0
        %v1873 = vmax.f32 %v1651, 0.0
        %v1874 = vmax.f32 %v1656, 0.0
        %v1875 = vmax.f32 %v1659, 0.0
        %v1876 = vmax.f32 %v1664, 0.0
        %v1877 = vmax.f32 %v1667, 0.0
        %v1878 = vmax.f32 %v1672, 0.0
        %v1879 = vmax.f32 %v1675, 0.0
        %v1880 = vmax.f32 %v1680, 0.0
        %v1881 = vmax.f32 %v1683, 0.0
        %v1882 = vmax.f32 %v1688, 0.0
        %v1883 = vmax.f32 %v1691, 0.0
        %v1884 = vmax.f32 %v1696, 0.0
        %v1885 = vmax.f32 %v1699, 0.0
        %v1886 = vmax.f32 %v1704, 0.0
        %v1887 = vmax.f32 %v1707, 0.0
        %v1888 = vmax.f32 %v1712, 0.0
        %v1889 = vmax.f32 %v1715, 0.0
        %v1890 = vmax.f32 %v1720, 0.0
        %v1891 = vmax.f32 %v1723, 0.0
        %v1892 = vmax.f32 %v1728, 0.0
        %v1893 = vmax.f32 %v1731, 0.0
        %v1894 = vmax.f32 %v1736, 0.0
        %v1895 = vmax.f32 %v1739, 0.0
        %v1896 = vmax.f32 %v1744, 0.0
        %v1897 = vmax.f32 %v1747, 0.0
        %v1898 = vmax.f32 %v1752, 0.0
        %v1899 = vmax.f32 %v1755, 0.0
        %v1900 = vmax.f32 %v1760, 0.0
        %v1901 = vmax.f32 %v1763, 0.0
        %v1902 = vmax.f32 %v1768, 0.0
        %v1903 = vmax.f32 %v1771, 0.0
        %v1904 = vmax.f32 %v1776, 0.0
        %v1905 = vmax.f32 %v1779, 0.0
        %v1906 = vmax.f32 %v1784, 0.0
        %v1907 = vmax.f32 %v1787, 0.0
        %v1908 = vmax.f32 %v1792, 0.0
        %v1909 = vmax.f32 %v1795, 0.0
        %v1910 = vmax.f32 %v1800, 0.0
        %v1911 = vmax.f32 %v1803, 0.0
        %v1912 = vmax.f32 %v1808, 0.0
        %v1913 = vmax.f32 %v1811, 0.0
        %v1914 = vmax.f32 %v1816, 0.0
        %v1915 = vmax.f32 %v1819, 0.0
        %v1916 = vmax.f32 %v1824, 0.0
        %v1917 = vmax.f32 %v1827, 0.0
        %v1918 = vmax.f32 %v1832, 0.0
        %v1919 = vmax.f32 %v1835, 0.0
        %v1920 = vmax.f32 %v1840, 0.0
        %v1921 = vmax.f32 %v1843, 0.0
        %v1922 = vmax.f32 %v1848, 0.0
        %v1923 = vmax.f32 %v1851, 0.0
        %v1924 = vmax.f32 %v1856, 0.0
        %v1925 = vmax.f32 %v1859, 0.0
        %vm1926 = vcmask 80896
        %1927 = vst.msk [vmem:[%s280] sm:$0xff] %vm1926, %v1862
        %1928 = vst.msk [vmem:[%s280 + $0x8] sm:$0xff] %vm1926, %v1863
        %1929 = vst.msk [vmem:[%s280 + $0x10] sm:$0xff] %vm1926, %v1864
        %1930 = vst.msk [vmem:[%s280 + $0x18] sm:$0xff] %vm1926, %v1865
        %1931 = vst.msk [vmem:[%s280 + $0x20] sm:$0xff] %vm1926, %v1866
        %1932 = vst.msk [vmem:[%s280 + $0x28] sm:$0xff] %vm1926, %v1867
        %1933 = vst.msk [vmem:[%s280 + $0x30] sm:$0xff] %vm1926, %v1868
        %1934 = vst.msk [vmem:[%s280 + $0x38] sm:$0xff] %vm1926, %v1869
        %1935 = vst.msk [vmem:[%s280 + $0x40] sm:$0xff] %vm1926, %v1870
        %1936 = vst.msk [vmem:[%s280 + $0x48] sm:$0xff] %vm1926, %v1871
        %1937 = vst.msk [vmem:[%s280 + $0x50] sm:$0xff] %vm1926, %v1872
        %1938 = vst.msk [vmem:[%s280 + $0x58] sm:$0xff] %vm1926, %v1873
        %1939 = vst.msk [vmem:[%s280 + $0x60] sm:$0xff] %vm1926, %v1874
        %1940 = vst.msk [vmem:[%s280 + $0x68] sm:$0xff] %vm1926, %v1875
        %1941 = vst.msk [vmem:[%s280 + $0x70] sm:$0xff] %vm1926, %v1876
        %1942 = vst.msk [vmem:[%s280 + $0x78] sm:$0xff] %vm1926, %v1877
        %1943 = vst.msk [vmem:[%s280 + $0x80] sm:$0xff] %vm1926, %v1878
        %1944 = vst.msk [vmem:[%s280 + $0x88] sm:$0xff] %vm1926, %v1879
        %1945 = vst.msk [vmem:[%s280 + $0x90] sm:$0xff] %vm1926, %v1880
        %1946 = vst.msk [vmem:[%s280 + $0x98] sm:$0xff] %vm1926, %v1881
        %1947 = vst.msk [vmem:[%s280 + $0xa0] sm:$0xff] %vm1926, %v1882
        %1948 = vst.msk [vmem:[%s280 + $0xa8] sm:$0xff] %vm1926, %v1883
        %1949 = vst.msk [vmem:[%s280 + $0xb0] sm:$0xff] %vm1926, %v1884
        %1950 = vst.msk [vmem:[%s280 + $0xb8] sm:$0xff] %vm1926, %v1885
        %1951 = vst.msk [vmem:[%s280 + $0xc0] sm:$0xff] %vm1926, %v1886
        %1952 = vst.msk [vmem:[%s280 + $0xc8] sm:$0xff] %vm1926, %v1887
        %1953 = vst.msk [vmem:[%s280 + $0xd0] sm:$0xff] %vm1926, %v1888
        %1954 = vst.msk [vmem:[%s280 + $0xd8] sm:$0xff] %vm1926, %v1889
        %1955 = vst.msk [vmem:[%s280 + $0xe0] sm:$0xff] %vm1926, %v1890
        %1956 = vst.msk [vmem:[%s280 + $0xe8] sm:$0xff] %vm1926, %v1891
        %1957 = vst.msk [vmem:[%s280 + $0xf0] sm:$0xff] %vm1926, %v1892
        %1958 = vst.msk [vmem:[%s280 + $0xf8] sm:$0xff] %vm1926, %v1893
        %1959 = vst.msk [vmem:[%s280 + $0x100] sm:$0xff] %vm1926, %v1894
        %1960 = vst.msk [vmem:[%s280 + $0x108] sm:$0xff] %vm1926, %v1895
        %1961 = vst.msk [vmem:[%s280 + $0x110] sm:$0xff] %vm1926, %v1896
        %1962 = vst.msk [vmem:[%s280 + $0x118] sm:$0xff] %vm1926, %v1897
        %1963 = vst.msk [vmem:[%s280 + $0x120] sm:$0xff] %vm1926, %v1898
        %1964 = vst.msk [vmem:[%s280 + $0x128] sm:$0xff] %vm1926, %v1899
        %1965 = vst.msk [vmem:[%s280 + $0x130] sm:$0xff] %vm1926, %v1900
        %1966 = vst.msk [vmem:[%s280 + $0x138] sm:$0xff] %vm1926, %v1901
        %1967 = vst.msk [vmem:[%s280 + $0x140] sm:$0xff] %vm1926, %v1902
        %1968 = vst.msk [vmem:[%s280 + $0x148] sm:$0xff] %vm1926, %v1903
        %1969 = vst.msk [vmem:[%s280 + $0x150] sm:$0xff] %vm1926, %v1904
        %1970 = vst.msk [vmem:[%s280 + $0x158] sm:$0xff] %vm1926, %v1905
        %1971 = vst.msk [vmem:[%s280 + $0x160] sm:$0xff] %vm1926, %v1906
        %1972 = vst.msk [vmem:[%s280 + $0x168] sm:$0xff] %vm1926, %v1907
        %1973 = vst.msk [vmem:[%s280 + $0x170] sm:$0xff] %vm1926, %v1908
        %1974 = vst.msk [vmem:[%s280 + $0x178] sm:$0xff] %vm1926, %v1909
        %1975 = vst.msk [vmem:[%s280 + $0x180] sm:$0xff] %vm1926, %v1910
        %1976 = vst.msk [vmem:[%s280 + $0x188] sm:$0xff] %vm1926, %v1911
        %1977 = vst.msk [vmem:[%s280 + $0x190] sm:$0xff] %vm1926, %v1912
        %1978 = vst.msk [vmem:[%s280 + $0x198] sm:$0xff] %vm1926, %v1913
        %1979 = vst.msk [vmem:[%s280 + $0x1a0] sm:$0xff] %vm1926, %v1914
        %1980 = vst.msk [vmem:[%s280 + $0x1a8] sm:$0xff] %vm1926, %v1915
        %1981 = vst.msk [vmem:[%s280 + $0x1b0] sm:$0xff] %vm1926, %v1916
        %1982 = vst.msk [vmem:[%s280 + $0x1b8] sm:$0xff] %vm1926, %v1917
        %1983 = vst.msk [vmem:[%s280 + $0x1c0] sm:$0xff] %vm1926, %v1918
        %1984 = vst.msk [vmem:[%s280 + $0x1c8] sm:$0xff] %vm1926, %v1919
        %1985 = vst.msk [vmem:[%s280 + $0x1d0] sm:$0xff] %vm1926, %v1920
        %1986 = vst.msk [vmem:[%s280 + $0x1d8] sm:$0xff] %vm1926, %v1921
        %1987 = vst.msk [vmem:[%s280 + $0x1e0] sm:$0xff] %vm1926, %v1922
        %1988 = vst.msk [vmem:[%s280 + $0x1e8] sm:$0xff] %vm1926, %v1923
        %1989 = vst.msk [vmem:[%s280 + $0x1f0] sm:$0xff] %vm1926, %v1924
        %1990 = vst.msk [vmem:[%s280 + $0x1f8] sm:$0xff] %vm1926, %v1925
        %s1991 = sand.u32 %s178, 1
        %s1992 = sand.u32 %s178, 1
        %s1993 = smul.addr %s1992, 512
        %s1994 = scalar_lea.vmem [#allocation2], %s1993
        // Predicated region
        $region49: #{tpu_custom_call.1} parent=47 // pred_check
          %p1995 = pneg %p188
        $region50: #{tpu_custom_call.1} parent=47 // pred_check_branch
          %1997 = sbr.rel (%p1995) target = $region52
        $region51: #{tpu_custom_call.1} parent=47 // pred_region
          %s1998 = smul.u32 64, %s18
          %s1999 = ssub.s32 125, %s1998
          %p2000 = scmp.lt.s32.totalorder %s1999, 64
          %s2001 = scalar_select %p2000, %s1999, 64
          %s2002 = smul.u32 128, %s2001
          %p2003 = scmp.ne.s32.totalorder 0, %s2002
          %s2004 = smul.addr %s1998, 8
          %s2005 = scalar_lea.vmem %s7, %s2004
          // Predicated region
          $region53: #{tpu_custom_call.1} parent=51 // pred_check
            %p2006 = pneg %p2003
          $region54: #{tpu_custom_call.1} parent=51 // pred_check_branch
            %2008 = sbr.rel (%p2006) target = $region56
          $region55: #{tpu_custom_call.1} parent=51 // pred_region
            // Predicated region
            $region57: #{tpu_custom_call.1} parent=55 // pred_check
              _
            $region58: #{tpu_custom_call.1} parent=55 // pred_check_branch
              %2010 = sbr.rel (0) target = $region60
            $region59: #{tpu_custom_call.1} parent=55 // pred_region
              // Predicated region
              $region79: #{tpu_custom_call.1} parent=59 // pred_check
                _
              $region80: #{tpu_custom_call.1} parent=59 // pred_check_branch
                %2186 = sbr.rel (0) target = $region82
              $region81: #{tpu_custom_call.1} parent=59 // pred_region
                %s2187 = sshrl.u32 %s2001, 6
                // While loop
                $region83: #{tpu_custom_call.1} parent=81 // loop_pre_header
                  _
                $region84: #{tpu_custom_call.1} parent=81 // loop_header
                  %s2189 = sphi 0, %s2191
                  %p2190 = scmp.ge.s32.totalorder %s2189, %s2187
                  %s2194 = sphi 0, %s2327
                  %s2195 = sphi %s1994, %s2330
                  %s2196 = sphi %s2005, %s2331
                $region85: #{tpu_custom_call.1} parent=81 // loop_header_branch
                  %2193 = sbr.rel (%p2190) target = $region89
                $region86: #{tpu_custom_call.1} parent=81 // loop_body
                  %v2197 = vld [vmem:[%s2195] sm:$0xff]
                  %2198 = vst [vmem:[%s2196] sm:$0xff] %v2197
                  %v2199 = vld [vmem:[%s2195 + $0x8] sm:$0xff]
                  %2200 = vst [vmem:[%s2196 + $0x8] sm:$0xff] %v2199
                  %v2201 = vld [vmem:[%s2195 + $0x10] sm:$0xff]
                  %2202 = vst [vmem:[%s2196 + $0x10] sm:$0xff] %v2201
                  %v2203 = vld [vmem:[%s2195 + $0x18] sm:$0xff]
                  %2204 = vst [vmem:[%s2196 + $0x18] sm:$0xff] %v2203
                  %v2205 = vld [vmem:[%s2195 + $0x20] sm:$0xff]
                  %2206 = vst [vmem:[%s2196 + $0x20] sm:$0xff] %v2205
                  %v2207 = vld [vmem:[%s2195 + $0x28] sm:$0xff]
                  %2208 = vst [vmem:[%s2196 + $0x28] sm:$0xff] %v2207
                  %v2209 = vld [vmem:[%s2195 + $0x30] sm:$0xff]
                  %2210 = vst [vmem:[%s2196 + $0x30] sm:$0xff] %v2209
                  %v2211 = vld [vmem:[%s2195 + $0x38] sm:$0xff]
                  %2212 = vst [vmem:[%s2196 + $0x38] sm:$0xff] %v2211
                  %v2213 = vld [vmem:[%s2195 + $0x40] sm:$0xff]
                  %2214 = vst [vmem:[%s2196 + $0x40] sm:$0xff] %v2213
                  %v2215 = vld [vmem:[%s2195 + $0x48] sm:$0xff]
                  %2216 = vst [vmem:[%s2196 + $0x48] sm:$0xff] %v2215
                  %v2217 = vld [vmem:[%s2195 + $0x50] sm:$0xff]
                  %2218 = vst [vmem:[%s2196 + $0x50] sm:$0xff] %v2217
                  %v2219 = vld [vmem:[%s2195 + $0x58] sm:$0xff]
                  %2220 = vst [vmem:[%s2196 + $0x58] sm:$0xff] %v2219
                  %v2221 = vld [vmem:[%s2195 + $0x60] sm:$0xff]
                  %2222 = vst [vmem:[%s2196 + $0x60] sm:$0xff] %v2221
                  %v2223 = vld [vmem:[%s2195 + $0x68] sm:$0xff]
                  %2224 = vst [vmem:[%s2196 + $0x68] sm:$0xff] %v2223
                  %v2225 = vld [vmem:[%s2195 + $0x70] sm:$0xff]
                  %2226 = vst [vmem:[%s2196 + $0x70] sm:$0xff] %v2225
                  %v2227 = vld [vmem:[%s2195 + $0x78] sm:$0xff]
                  %2228 = vst [vmem:[%s2196 + $0x78] sm:$0xff] %v2227
                  %v2229 = vld [vmem:[%s2195 + $0x80] sm:$0xff]
                  %2230 = vst [vmem:[%s2196 + $0x80] sm:$0xff] %v2229
                  %v2231 = vld [vmem:[%s2195 + $0x88] sm:$0xff]
                  %2232 = vst [vmem:[%s2196 + $0x88] sm:$0xff] %v2231
                  %v2233 = vld [vmem:[%s2195 + $0x90] sm:$0xff]
                  %2234 = vst [vmem:[%s2196 + $0x90] sm:$0xff] %v2233
                  %v2235 = vld [vmem:[%s2195 + $0x98] sm:$0xff]
                  %2236 = vst [vmem:[%s2196 + $0x98] sm:$0xff] %v2235
                  %v2237 = vld [vmem:[%s2195 + $0xa0] sm:$0xff]
                  %2238 = vst [vmem:[%s2196 + $0xa0] sm:$0xff] %v2237
                  %v2239 = vld [vmem:[%s2195 + $0xa8] sm:$0xff]
                  %2240 = vst [vmem:[%s2196 + $0xa8] sm:$0xff] %v2239
                  %v2241 = vld [vmem:[%s2195 + $0xb0] sm:$0xff]
                  %2242 = vst [vmem:[%s2196 + $0xb0] sm:$0xff] %v2241
                  %v2243 = vld [vmem:[%s2195 + $0xb8] sm:$0xff]
                  %2244 = vst [vmem:[%s2196 + $0xb8] sm:$0xff] %v2243
                  %v2245 = vld [vmem:[%s2195 + $0xc0] sm:$0xff]
                  %2246 = vst [vmem:[%s2196 + $0xc0] sm:$0xff] %v2245
                  %v2247 = vld [vmem:[%s2195 + $0xc8] sm:$0xff]
                  %2248 = vst [vmem:[%s2196 + $0xc8] sm:$0xff] %v2247
                  %v2249 = vld [vmem:[%s2195 + $0xd0] sm:$0xff]
                  %2250 = vst [vmem:[%s2196 + $0xd0] sm:$0xff] %v2249
                  %v2251 = vld [vmem:[%s2195 + $0xd8] sm:$0xff]
                  %2252 = vst [vmem:[%s2196 + $0xd8] sm:$0xff] %v2251
                  %v2253 = vld [vmem:[%s2195 + $0xe0] sm:$0xff]
                  %2254 = vst [vmem:[%s2196 + $0xe0] sm:$0xff] %v2253
                  %v2255 = vld [vmem:[%s2195 + $0xe8] sm:$0xff]
                  %2256 = vst [vmem:[%s2196 + $0xe8] sm:$0xff] %v2255
                  %v2257 = vld [vmem:[%s2195 + $0xf0] sm:$0xff]
                  %2258 = vst [vmem:[%s2196 + $0xf0] sm:$0xff] %v2257
                  %v2259 = vld [vmem:[%s2195 + $0xf8] sm:$0xff]
                  %2260 = vst [vmem:[%s2196 + $0xf8] sm:$0xff] %v2259
                  %v2261 = vld [vmem:[%s2195 + $0x100] sm:$0xff]
                  %2262 = vst [vmem:[%s2196 + $0x100] sm:$0xff] %v2261
                  %v2263 = vld [vmem:[%s2195 + $0x108] sm:$0xff]
                  %2264 = vst [vmem:[%s2196 + $0x108] sm:$0xff] %v2263
                  %v2265 = vld [vmem:[%s2195 + $0x110] sm:$0xff]
                  %2266 = vst [vmem:[%s2196 + $0x110] sm:$0xff] %v2265
                  %v2267 = vld [vmem:[%s2195 + $0x118] sm:$0xff]
                  %2268 = vst [vmem:[%s2196 + $0x118] sm:$0xff] %v2267
                  %v2269 = vld [vmem:[%s2195 + $0x120] sm:$0xff]
                  %2270 = vst [vmem:[%s2196 + $0x120] sm:$0xff] %v2269
                  %v2271 = vld [vmem:[%s2195 + $0x128] sm:$0xff]
                  %2272 = vst [vmem:[%s2196 + $0x128] sm:$0xff] %v2271
                  %v2273 = vld [vmem:[%s2195 + $0x130] sm:$0xff]
                  %2274 = vst [vmem:[%s2196 + $0x130] sm:$0xff] %v2273
                  %v2275 = vld [vmem:[%s2195 + $0x138] sm:$0xff]
                  %2276 = vst [vmem:[%s2196 + $0x138] sm:$0xff] %v2275
                  %v2277 = vld [vmem:[%s2195 + $0x140] sm:$0xff]
                  %2278 = vst [vmem:[%s2196 + $0x140] sm:$0xff] %v2277
                  %v2279 = vld [vmem:[%s2195 + $0x148] sm:$0xff]
                  %2280 = vst [vmem:[%s2196 + $0x148] sm:$0xff] %v2279
                  %v2281 = vld [vmem:[%s2195 + $0x150] sm:$0xff]
                  %2282 = vst [vmem:[%s2196 + $0x150] sm:$0xff] %v2281
                  %v2283 = vld [vmem:[%s2195 + $0x158] sm:$0xff]
                  %2284 = vst [vmem:[%s2196 + $0x158] sm:$0xff] %v2283
                  %v2285 = vld [vmem:[%s2195 + $0x160] sm:$0xff]
                  %2286 = vst [vmem:[%s2196 + $0x160] sm:$0xff] %v2285
                  %v2287 = vld [vmem:[%s2195 + $0x168] sm:$0xff]
                  %2288 = vst [vmem:[%s2196 + $0x168] sm:$0xff] %v2287
                  %v2289 = vld [vmem:[%s2195 + $0x170] sm:$0xff]
                  %2290 = vst [vmem:[%s2196 + $0x170] sm:$0xff] %v2289
                  %v2291 = vld [vmem:[%s2195 + $0x178] sm:$0xff]
                  %2292 = vst [vmem:[%s2196 + $0x178] sm:$0xff] %v2291
                  %v2293 = vld [vmem:[%s2195 + $0x180] sm:$0xff]
                  %2294 = vst [vmem:[%s2196 + $0x180] sm:$0xff] %v2293
                  %v2295 = vld [vmem:[%s2195 + $0x188] sm:$0xff]
                  %2296 = vst [vmem:[%s2196 + $0x188] sm:$0xff] %v2295
                  %v2297 = vld [vmem:[%s2195 + $0x190] sm:$0xff]
                  %2298 = vst [vmem:[%s2196 + $0x190] sm:$0xff] %v2297
                  %v2299 = vld [vmem:[%s2195 + $0x198] sm:$0xff]
                  %2300 = vst [vmem:[%s2196 + $0x198] sm:$0xff] %v2299
                  %v2301 = vld [vmem:[%s2195 + $0x1a0] sm:$0xff]
                  %2302 = vst [vmem:[%s2196 + $0x1a0] sm:$0xff] %v2301
                  %v2303 = vld [vmem:[%s2195 + $0x1a8] sm:$0xff]
                  %2304 = vst [vmem:[%s2196 + $0x1a8] sm:$0xff] %v2303
                  %v2305 = vld [vmem:[%s2195 + $0x1b0] sm:$0xff]
                  %2306 = vst [vmem:[%s2196 + $0x1b0] sm:$0xff] %v2305
                  %v2307 = vld [vmem:[%s2195 + $0x1b8] sm:$0xff]
                  %2308 = vst [vmem:[%s2196 + $0x1b8] sm:$0xff] %v2307
                  %v2309 = vld [vmem:[%s2195 + $0x1c0] sm:$0xff]
                  %2310 = vst [vmem:[%s2196 + $0x1c0] sm:$0xff] %v2309
                  %v2311 = vld [vmem:[%s2195 + $0x1c8] sm:$0xff]
                  %2312 = vst [vmem:[%s2196 + $0x1c8] sm:$0xff] %v2311
                  %v2313 = vld [vmem:[%s2195 + $0x1d0] sm:$0xff]
                  %2314 = vst [vmem:[%s2196 + $0x1d0] sm:$0xff] %v2313
                  %v2315 = vld [vmem:[%s2195 + $0x1d8] sm:$0xff]
                  %2316 = vst [vmem:[%s2196 + $0x1d8] sm:$0xff] %v2315
                  %v2317 = vld [vmem:[%s2195 + $0x1e0] sm:$0xff]
                  %2318 = vst [vmem:[%s2196 + $0x1e0] sm:$0xff] %v2317
                  %v2319 = vld [vmem:[%s2195 + $0x1e8] sm:$0xff]
                  %2320 = vst [vmem:[%s2196 + $0x1e8] sm:$0xff] %v2319
                  %v2321 = vld [vmem:[%s2195 + $0x1f0] sm:$0xff]
                  %2322 = vst [vmem:[%s2196 + $0x1f0] sm:$0xff] %v2321
                  %v2323 = vld [vmem:[%s2195 + $0x1f8] sm:$0xff]
                  %2324 = vst [vmem:[%s2196 + $0x1f8] sm:$0xff] %v2323
                  %s2325 = sadd.s32 1, %s2194
                  %p2326 = scmp.ge.s32.totalorder %s2325, %s2187
                  %s2327 = scalar_select %p2326, 0, %s2325
                  %s2328 = smul.u32 %s2327, 512
                  %s2329 = smul.u32 %s2327, 512
                  %s2330 = scalar_lea.vmem %s1994, %s2328 [#allocation2]
                  %s2331 = scalar_lea.vmem %s2005, %s2329
                $region87: #{tpu_custom_call.1} parent=81 // loop_footer
                  %s2191 = sadd.s32 %s2189, 1
                $region88: #{tpu_custom_call.1} parent=81 // loop_footer_branch
                  %2188 = sbr.rel target = $region84
                $region89: #{tpu_custom_call.1} parent=81 // loop_exit
                  _
                %s2332 = sshrl.u32 %s2001, 6
                %s2333 = sand.u32 %s2001, 63
                %s2334 = smul.u32 %s2332, 64
                %s2335 = smul.u32 8, %s2334
                %s2336 = scalar_lea.vmem %s1994, %s2335 [#allocation2]
                %s2337 = smul.u32 8, %s2334
                %s2338 = scalar_lea.vmem %s2005, %s2337
                // While loop
                $region90: #{tpu_custom_call.1} parent=81 // loop_pre_header
                  _
                $region91: #{tpu_custom_call.1} parent=81 // loop_header
                  %s2340 = sphi 0, %s2342
                  %p2341 = scmp.ge.s32.totalorder %s2340, %s2333
                  %s2345 = sphi 0, %s2352
                  %s2346 = sphi %s2336, %s2355
                  %s2347 = sphi %s2338, %s2356
                $region92: #{tpu_custom_call.1} parent=81 // loop_header_branch
                  %2344 = sbr.rel (%p2341) target = $region96
                $region93: #{tpu_custom_call.1} parent=81 // loop_body
                  %v2348 = vld [vmem:[%s2346] sm:$0xff]
                  %2349 = vst [vmem:[%s2347] sm:$0xff] %v2348
                  %s2350 = sadd.s32 1, %s2345
                  %p2351 = scmp.ge.s32.totalorder %s2350, %s2333
                  %s2352 = scalar_select %p2351, 0, %s2350
                  %s2353 = smul.u32 %s2352, 8
                  %s2354 = smul.u32 %s2352, 8
                  %s2355 = scalar_lea.vmem %s2336, %s2353 [#allocation2]
                  %s2356 = scalar_lea.vmem %s2338, %s2354
                $region94: #{tpu_custom_call.1} parent=81 // loop_footer
                  %s2342 = sadd.s32 %s2340, 1
                $region95: #{tpu_custom_call.1} parent=81 // loop_footer_branch
                  %2339 = sbr.rel target = $region91
                $region96: #{tpu_custom_call.1} parent=81 // loop_exit
                  _
              $region82: #{tpu_custom_call.1} parent=59 // pred_fallthru
                _
              // Predicated region
              $region97: #{tpu_custom_call.1} parent=59 // pred_check
                _
              $region98: #{tpu_custom_call.1} parent=59 // pred_check_branch
                %2358 = sbr.rel target = $region100
              $region99: #{tpu_custom_call.1} parent=59 // pred_region
                _
              $region100: #{tpu_custom_call.1} parent=59 // pred_fallthru
                _
            $region60: #{tpu_custom_call.1} parent=55 // pred_fallthru
              _
            // Predicated region
            $region61: #{tpu_custom_call.1} parent=55 // pred_check
              _
            $region62: #{tpu_custom_call.1} parent=55 // pred_check_branch
              %2012 = sbr.rel target = $region64
            $region63: #{tpu_custom_call.1} parent=55 // pred_region
              %s2014 = ssub.s32 256, 1
              %s2015 = sshrl.u32 %s2001, 6
              // While loop
              $region65: #{tpu_custom_call.1} parent=63 // loop_pre_header
                _
              $region66: #{tpu_custom_call.1} parent=63 // loop_header
                %s2017 = sphi 0, %s2019
                %p2018 = scmp.ge.s32.totalorder %s2017, %s2015
                %s2022 = sphi 0, %s2155
                %s2023 = sphi %s1994, %s2158
                %s2024 = sphi %s2005, %s2159
              $region67: #{tpu_custom_call.1} parent=63 // loop_header_branch
                %2021 = sbr.rel (%p2018) target = $region71
              $region68: #{tpu_custom_call.1} parent=63 // loop_body
                %v2025 = vld [vmem:[%s2023] sm:%s2014]
                %2026 = vst [vmem:[%s2024] sm:%s2014] %v2025
                %v2027 = vld [vmem:[%s2023 + $0x8] sm:%s2014]
                %2028 = vst [vmem:[%s2024 + $0x8] sm:%s2014] %v2027
                %v2029 = vld [vmem:[%s2023 + $0x10] sm:%s2014]
                %2030 = vst [vmem:[%s2024 + $0x10] sm:%s2014] %v2029
                %v2031 = vld [vmem:[%s2023 + $0x18] sm:%s2014]
                %2032 = vst [vmem:[%s2024 + $0x18] sm:%s2014] %v2031
                %v2033 = vld [vmem:[%s2023 + $0x20] sm:%s2014]
                %2034 = vst [vmem:[%s2024 + $0x20] sm:%s2014] %v2033
                %v2035 = vld [vmem:[%s2023 + $0x28] sm:%s2014]
                %2036 = vst [vmem:[%s2024 + $0x28] sm:%s2014] %v2035
                %v2037 = vld [vmem:[%s2023 + $0x30] sm:%s2014]
                %2038 = vst [vmem:[%s2024 + $0x30] sm:%s2014] %v2037
                %v2039 = vld [vmem:[%s2023 + $0x38] sm:%s2014]
                %2040 = vst [vmem:[%s2024 + $0x38] sm:%s2014] %v2039
                %v2041 = vld [vmem:[%s2023 + $0x40] sm:%s2014]
                %2042 = vst [vmem:[%s2024 + $0x40] sm:%s2014] %v2041
                %v2043 = vld [vmem:[%s2023 + $0x48] sm:%s2014]
                %2044 = vst [vmem:[%s2024 + $0x48] sm:%s2014] %v2043
                %v2045 = vld [vmem:[%s2023 + $0x50] sm:%s2014]
                %2046 = vst [vmem:[%s2024 + $0x50] sm:%s2014] %v2045
                %v2047 = vld [vmem:[%s2023 + $0x58] sm:%s2014]
                %2048 = vst [vmem:[%s2024 + $0x58] sm:%s2014] %v2047
                %v2049 = vld [vmem:[%s2023 + $0x60] sm:%s2014]
                %2050 = vst [vmem:[%s2024 + $0x60] sm:%s2014] %v2049
                %v2051 = vld [vmem:[%s2023 + $0x68] sm:%s2014]
                %2052 = vst [vmem:[%s2024 + $0x68] sm:%s2014] %v2051
                %v2053 = vld [vmem:[%s2023 + $0x70] sm:%s2014]
                %2054 = vst [vmem:[%s2024 + $0x70] sm:%s2014] %v2053
                %v2055 = vld [vmem:[%s2023 + $0x78] sm:%s2014]
                %2056 = vst [vmem:[%s2024 + $0x78] sm:%s2014] %v2055
                %v2057 = vld [vmem:[%s2023 + $0x80] sm:%s2014]
                %2058 = vst [vmem:[%s2024 + $0x80] sm:%s2014] %v2057
                %v2059 = vld [vmem:[%s2023 + $0x88] sm:%s2014]
                %2060 = vst [vmem:[%s2024 + $0x88] sm:%s2014] %v2059
                %v2061 = vld [vmem:[%s2023 + $0x90] sm:%s2014]
                %2062 = vst [vmem:[%s2024 + $0x90] sm:%s2014] %v2061
                %v2063 = vld [vmem:[%s2023 + $0x98] sm:%s2014]
                %2064 = vst [vmem:[%s2024 + $0x98] sm:%s2014] %v2063
                %v2065 = vld [vmem:[%s2023 + $0xa0] sm:%s2014]
                %2066 = vst [vmem:[%s2024 + $0xa0] sm:%s2014] %v2065
                %v2067 = vld [vmem:[%s2023 + $0xa8] sm:%s2014]
                %2068 = vst [vmem:[%s2024 + $0xa8] sm:%s2014] %v2067
                %v2069 = vld [vmem:[%s2023 + $0xb0] sm:%s2014]
                %2070 = vst [vmem:[%s2024 + $0xb0] sm:%s2014] %v2069
                %v2071 = vld [vmem:[%s2023 + $0xb8] sm:%s2014]
                %2072 = vst [vmem:[%s2024 + $0xb8] sm:%s2014] %v2071
                %v2073 = vld [vmem:[%s2023 + $0xc0] sm:%s2014]
                %2074 = vst [vmem:[%s2024 + $0xc0] sm:%s2014] %v2073
                %v2075 = vld [vmem:[%s2023 + $0xc8] sm:%s2014]
                %2076 = vst [vmem:[%s2024 + $0xc8] sm:%s2014] %v2075
                %v2077 = vld [vmem:[%s2023 + $0xd0] sm:%s2014]
                %2078 = vst [vmem:[%s2024 + $0xd0] sm:%s2014] %v2077
                %v2079 = vld [vmem:[%s2023 + $0xd8] sm:%s2014]
                %2080 = vst [vmem:[%s2024 + $0xd8] sm:%s2014] %v2079
                %v2081 = vld [vmem:[%s2023 + $0xe0] sm:%s2014]
                %2082 = vst [vmem:[%s2024 + $0xe0] sm:%s2014] %v2081
                %v2083 = vld [vmem:[%s2023 + $0xe8] sm:%s2014]
                %2084 = vst [vmem:[%s2024 + $0xe8] sm:%s2014] %v2083
                %v2085 = vld [vmem:[%s2023 + $0xf0] sm:%s2014]
                %2086 = vst [vmem:[%s2024 + $0xf0] sm:%s2014] %v2085
                %v2087 = vld [vmem:[%s2023 + $0xf8] sm:%s2014]
                %2088 = vst [vmem:[%s2024 + $0xf8] sm:%s2014] %v2087
                %v2089 = vld [vmem:[%s2023 + $0x100] sm:%s2014]
                %2090 = vst [vmem:[%s2024 + $0x100] sm:%s2014] %v2089
                %v2091 = vld [vmem:[%s2023 + $0x108] sm:%s2014]
                %2092 = vst [vmem:[%s2024 + $0x108] sm:%s2014] %v2091
                %v2093 = vld [vmem:[%s2023 + $0x110] sm:%s2014]
                %2094 = vst [vmem:[%s2024 + $0x110] sm:%s2014] %v2093
                %v2095 = vld [vmem:[%s2023 + $0x118] sm:%s2014]
                %2096 = vst [vmem:[%s2024 + $0x118] sm:%s2014] %v2095
                %v2097 = vld [vmem:[%s2023 + $0x120] sm:%s2014]
                %2098 = vst [vmem:[%s2024 + $0x120] sm:%s2014] %v2097
                %v2099 = vld [vmem:[%s2023 + $0x128] sm:%s2014]
                %2100 = vst [vmem:[%s2024 + $0x128] sm:%s2014] %v2099
                %v2101 = vld [vmem:[%s2023 + $0x130] sm:%s2014]
                %2102 = vst [vmem:[%s2024 + $0x130] sm:%s2014] %v2101
                %v2103 = vld [vmem:[%s2023 + $0x138] sm:%s2014]
                %2104 = vst [vmem:[%s2024 + $0x138] sm:%s2014] %v2103
                %v2105 = vld [vmem:[%s2023 + $0x140] sm:%s2014]
                %2106 = vst [vmem:[%s2024 + $0x140] sm:%s2014] %v2105
                %v2107 = vld [vmem:[%s2023 + $0x148] sm:%s2014]
                %2108 = vst [vmem:[%s2024 + $0x148] sm:%s2014] %v2107
                %v2109 = vld [vmem:[%s2023 + $0x150] sm:%s2014]
                %2110 = vst [vmem:[%s2024 + $0x150] sm:%s2014] %v2109
                %v2111 = vld [vmem:[%s2023 + $0x158] sm:%s2014]
                %2112 = vst [vmem:[%s2024 + $0x158] sm:%s2014] %v2111
                %v2113 = vld [vmem:[%s2023 + $0x160] sm:%s2014]
                %2114 = vst [vmem:[%s2024 + $0x160] sm:%s2014] %v2113
                %v2115 = vld [vmem:[%s2023 + $0x168] sm:%s2014]
                %2116 = vst [vmem:[%s2024 + $0x168] sm:%s2014] %v2115
                %v2117 = vld [vmem:[%s2023 + $0x170] sm:%s2014]
                %2118 = vst [vmem:[%s2024 + $0x170] sm:%s2014] %v2117
                %v2119 = vld [vmem:[%s2023 + $0x178] sm:%s2014]
                %2120 = vst [vmem:[%s2024 + $0x178] sm:%s2014] %v2119
                %v2121 = vld [vmem:[%s2023 + $0x180] sm:%s2014]
                %2122 = vst [vmem:[%s2024 + $0x180] sm:%s2014] %v2121
                %v2123 = vld [vmem:[%s2023 + $0x188] sm:%s2014]
                %2124 = vst [vmem:[%s2024 + $0x188] sm:%s2014] %v2123
                %v2125 = vld [vmem:[%s2023 + $0x190] sm:%s2014]
                %2126 = vst [vmem:[%s2024 + $0x190] sm:%s2014] %v2125
                %v2127 = vld [vmem:[%s2023 + $0x198] sm:%s2014]
                %2128 = vst [vmem:[%s2024 + $0x198] sm:%s2014] %v2127
                %v2129 = vld [vmem:[%s2023 + $0x1a0] sm:%s2014]
                %2130 = vst [vmem:[%s2024 + $0x1a0] sm:%s2014] %v2129
                %v2131 = vld [vmem:[%s2023 + $0x1a8] sm:%s2014]
                %2132 = vst [vmem:[%s2024 + $0x1a8] sm:%s2014] %v2131
                %v2133 = vld [vmem:[%s2023 + $0x1b0] sm:%s2014]
                %2134 = vst [vmem:[%s2024 + $0x1b0] sm:%s2014] %v2133
                %v2135 = vld [vmem:[%s2023 + $0x1b8] sm:%s2014]
                %2136 = vst [vmem:[%s2024 + $0x1b8] sm:%s2014] %v2135
                %v2137 = vld [vmem:[%s2023 + $0x1c0] sm:%s2014]
                %2138 = vst [vmem:[%s2024 + $0x1c0] sm:%s2014] %v2137
                %v2139 = vld [vmem:[%s2023 + $0x1c8] sm:%s2014]
                %2140 = vst [vmem:[%s2024 + $0x1c8] sm:%s2014] %v2139
                %v2141 = vld [vmem:[%s2023 + $0x1d0] sm:%s2014]
                %2142 = vst [vmem:[%s2024 + $0x1d0] sm:%s2014] %v2141
                %v2143 = vld [vmem:[%s2023 + $0x1d8] sm:%s2014]
                %2144 = vst [vmem:[%s2024 + $0x1d8] sm:%s2014] %v2143
                %v2145 = vld [vmem:[%s2023 + $0x1e0] sm:%s2014]
                %2146 = vst [vmem:[%s2024 + $0x1e0] sm:%s2014] %v2145
                %v2147 = vld [vmem:[%s2023 + $0x1e8] sm:%s2014]
                %2148 = vst [vmem:[%s2024 + $0x1e8] sm:%s2014] %v2147
                %v2149 = vld [vmem:[%s2023 + $0x1f0] sm:%s2014]
                %2150 = vst [vmem:[%s2024 + $0x1f0] sm:%s2014] %v2149
                %v2151 = vld [vmem:[%s2023 + $0x1f8] sm:%s2014]
                %2152 = vst [vmem:[%s2024 + $0x1f8] sm:%s2014] %v2151
                %s2153 = sadd.s32 1, %s2022
                %p2154 = scmp.ge.s32.totalorder %s2153, %s2015
                %s2155 = scalar_select %p2154, 0, %s2153
                %s2156 = smul.u32 %s2155, 512
                %s2157 = smul.u32 %s2155, 512
                %s2158 = scalar_lea.vmem %s1994, %s2156 [#allocation2]
                %s2159 = scalar_lea.vmem %s2005, %s2157
              $region69: #{tpu_custom_call.1} parent=63 // loop_footer
                %s2019 = sadd.s32 %s2017, 1
              $region70: #{tpu_custom_call.1} parent=63 // loop_footer_branch
                %2016 = sbr.rel target = $region66
              $region71: #{tpu_custom_call.1} parent=63 // loop_exit
                _
              %s2160 = sshrl.u32 %s2001, 6
              %s2161 = sand.u32 %s2001, 63
              %s2162 = smul.u32 %s2160, 64
              %s2163 = smul.u32 8, %s2162
              %s2164 = scalar_lea.vmem %s1994, %s2163 [#allocation2]
              %s2165 = smul.u32 8, %s2162
              %s2166 = scalar_lea.vmem %s2005, %s2165
              // While loop
              $region72: #{tpu_custom_call.1} parent=63 // loop_pre_header
                _
              $region73: #{tpu_custom_call.1} parent=63 // loop_header
                %s2168 = sphi 0, %s2170
                %p2169 = scmp.ge.s32.totalorder %s2168, %s2161
                %s2173 = sphi 0, %s2180
                %s2174 = sphi %s2164, %s2183
                %s2175 = sphi %s2166, %s2184
              $region74: #{tpu_custom_call.1} parent=63 // loop_header_branch
                %2172 = sbr.rel (%p2169) target = $region78
              $region75: #{tpu_custom_call.1} parent=63 // loop_body
                %v2176 = vld [vmem:[%s2174] sm:%s2014]
                %2177 = vst [vmem:[%s2175] sm:%s2014] %v2176
                %s2178 = sadd.s32 1, %s2173
                %p2179 = scmp.ge.s32.totalorder %s2178, %s2161
                %s2180 = scalar_select %p2179, 0, %s2178
                %s2181 = smul.u32 %s2180, 8
                %s2182 = smul.u32 %s2180, 8
                %s2183 = scalar_lea.vmem %s2164, %s2181 [#allocation2]
                %s2184 = scalar_lea.vmem %s2166, %s2182
              $region76: #{tpu_custom_call.1} parent=63 // loop_footer
                %s2170 = sadd.s32 %s2168, 1
              $region77: #{tpu_custom_call.1} parent=63 // loop_footer_branch
                %2167 = sbr.rel target = $region73
              $region78: #{tpu_custom_call.1} parent=63 // loop_exit
                _
            $region64: #{tpu_custom_call.1} parent=55 // pred_fallthru
              _
          $region56: #{tpu_custom_call.1} parent=51 // pred_fallthru
            _
          %2359 = vnop
        $region52: #{tpu_custom_call.1} parent=47 // pred_fallthru
          _
      $region48: #{tpu_custom_call.1} parent=5 // pred_fallthru
        _
      %p2360 = scmp.le.s32.totalorder 2, %s13
      // Predicated region
      $region101: #{tpu_custom_call.1} parent=5 // pred_check
        %p2361 = pneg %p2360
      $region102: #{tpu_custom_call.1} parent=5 // pred_check_branch
        %2363 = sbr.rel (%p2361) target = $region104
      $region103: #{tpu_custom_call.1} parent=5 // pred_region
        %s2364 = ssub.s32 %s13, 2
        // Predicated region
        $region105: #{tpu_custom_call.1} parent=103 // pred_check
          %p2365 = pneg %p194
        $region106: #{tpu_custom_call.1} parent=103 // pred_check_branch
          %2367 = sbr.rel (%p2365) target = $region108
        $region107: #{tpu_custom_call.1} parent=103 // pred_region
          %s2368 = sand.u32 %s179, 1
          %s2369 = sand.u32 %s179, 1
          %s2370 = smul.addr %s2369, 512
          %s2371 = scalar_lea.vmem [#allocation2], %s2370
        $region108: #{tpu_custom_call.1} parent=103 // pred_fallthru
          _
      $region104: #{tpu_custom_call.1} parent=5 // pred_fallthru
        _
    $region6: #{tpu_custom_call.1} parent=1 // loop_footer
      %s17 = sadd.s32 1, %s13
    $region7: #{tpu_custom_call.1} parent=1 // loop_footer_branch
      %12 = sbr.rel target = $region3
    $region8: #{tpu_custom_call.1} parent=1 // loop_exit
      _

</llo_original>
